<compile_context>
chip_gen: v6e
topology: v6e:2x2x1
jax: 0.10.0
libtpu: 0.0.40
codegen_flags: <defaults>
</compile_context>

<pallas_src>
import functools

import jax
import jax.numpy as jnp
from jax import lax
from jax.experimental import pallas as pl
from jax.experimental.pallas import tpu as pltpu

NEG_SLOPE = 0.01   # nn.LeakyReLU() default
EPS = 1e-5         # nn.BatchNorm2d default


def _round_up(v, m):
    return ((v + m - 1) // m) * m


def _tile_and_vmem_limit(hwo_pad):
    """Spatial (lane) tile + scoped-VMEM budget, derived per TPU generation."""
    try:
        cap = int(getattr(pltpu.get_tpu_info(), "vmem_capacity_bytes",
                          128 * 1024 * 1024))
    except Exception:                     # interpret mode / query unavailable
        cap = 128 * 1024 * 1024
    tw_cap = 512 if cap >= (96 << 20) else 256      # 256 on v7x (64 MiB VMEM)
    tw = min(tw_cap, hwo_pad)
    while hwo_pad % tw:                             # hwo_pad is a mult. of 128
        tw //= 2
    vmem_limit = int(min(cap * 3 // 4, 64 << 20))
    return tw, vmem_limit


# --------------------------------------------------------------------------
# Pass 1: conv + residual(1x1 conv -> masked max-pool) + BN partial sums
# --------------------------------------------------------------------------
def conv_res_stats_kernel(p_ref, w1_ref, wr_ref, b1_ref, br_ref, mask_ref,
                          y_ref, r_ref, stats_ref, *, k, Cin, Cout):
    j = pl.program_id(1)
    kk = k * k

    p = p_ref[0]                                               # (KC, TW) bf16
    m = mask_ref[...]                                          # (kk+1, TW) f32

    # KxK conv: one MXU matmul over the im2col patch tile, f32 accumulation.
    y = jnp.dot(w1_ref[...], p, preferred_element_type=jnp.float32)
    y = y + b1_ref[...]                                        # (Cout, TW)
    y_ref[0] = y.astype(y_ref.dtype)

    # Two-pass BatchNorm partials, accumulated in the resident stats output
    # block over the trailing "arbitrary" spatial axis; padded lanes masked.
    # TODO(synk): E[x^2]-E[x]^2 cancels badly when |mean| >> std at scale;
    # switch to shifted / Welford-style partial sums if that regime appears.
    lane_valid = m[0:1, :]                                     # (1, TW)

    @pl.when(j == 0)
    def _():
        stats_ref[...] = jnp.zeros_like(stats_ref)

    stats_ref[0, 0:Cout, :] += jnp.sum(y * lane_valid, axis=1, keepdims=True)
    stats_ref[0, Cout:2 * Cout, :] += jnp.sum(y * y * lane_valid, axis=1,
                                              keepdims=True)

    # Residual path: 1x1 conv evaluated at each pooling-window tap (kk small
    # matmuls against the single resident (Cout, Cin) weight) + masked max.
    # Sentinel is -1e30 (not -inf): every output window has >= 1 valid tap for
    # this geometry, and it stays finite through the bf16 store of the fully
    # masked padded lanes (which the wrapper crops anyway).
    r_max = None
    for q in range(kk):                                        # static, small
        rq = jnp.dot(wr_ref[...], p[q * Cin:(q + 1) * Cin, :],
                     preferred_element_type=jnp.float32)       # (Cout, TW)
        rq = jnp.where(m[q + 1:q + 2, :] > 0.5, rq, jnp.float32(-1e30))
        r_max = rq if r_max is None else jnp.maximum(r_max, rq)
    r_ref[0] = (r_max + br_ref[...]).astype(r_ref.dtype)


# --------------------------------------------------------------------------
# Pass 2: folded BN/cond affine + LeakyReLU + residual add (pure elementwise)
# --------------------------------------------------------------------------
def affine_act_res_kernel(y_ref, r_ref, a_ref, bc_ref, o_ref):
    y = y_ref[0].astype(jnp.float32) * a_ref[0] + bc_ref[0]    # (Cout, TW)
    y = jnp.where(y >= 0.0, y, NEG_SLOPE * y)                  # LeakyReLU
    o_ref[0] = (y + r_ref[0].astype(jnp.float32)).astype(o_ref.dtype)


# --------------------------------------------------------------------------
# Wrapper
# --------------------------------------------------------------------------
def _extract_windows(x_nhwc, k, s, p, Ho, Wo):
    """(k*k, B, Ho, Wo, C) window slices (zero-padded outside the image)."""
    xpad = jnp.pad(x_nhwc, ((0, 0), (p, p), (p, p), (0, 0)))
    slices = []
    for ki in range(k):
        for kj in range(k):
            slices.append(xpad[:, ki:ki + s * Ho:s, kj:kj + s * Wo:s, :])
    return jnp.stack(slices, axis=0)


def _pool_masks(k, s, p, H, W, Ho, Wo, HWo, HWo_pad):
    """(kk+1, HWo_pad) f32: row 0 = lane-valid, rows 1..kk = pool-tap valid."""
    cols = jnp.arange(HWo_pad)
    ho = cols // Wo
    wo = cols % Wo
    in_range = cols < HWo
    rows = [in_range.astype(jnp.float32)]
    for ki in range(k):
        for kj in range(k):
            ii = ho * s + ki - p
            jj = wo * s + kj - p
            v = (ii >= 0) & (ii < H) & (jj >= 0) & (jj < W) & in_range
            rows.append(v.astype(jnp.float32))
    return jnp.stack(rows, axis=0)


def resnet_block_forward(x, cond, params, conv_params):
    """x: (B, Cin, H, W) NCHW (like PyTorch); cond: (B, cond_dim)."""
    k, s, p = conv_params
    B, Cin, H, W = x.shape
    w1 = params["w1"]                              # (Cout, Cin, k, k)
    Cout = w1.shape[0]
    Ho = (H + 2 * p - k) // s + 1
    Wo = (W + 2 * p - k) // s + 1
    HWo = Ho * Wo
    kk = k * k
    KC = kk * Cin
    HWo_pad = _round_up(HWo, 128)                  # lane-dense output blocks

    TW, vmem_limit = _tile_and_vmem_limit(HWo_pad)
    num_w = HWo_pad // TW

    # ---- host-side im2col -> (B, k*k*Cin, HWo_pad), channels on sublanes ---
    # TODO(synk): move im2col inside the kernel (DMA NHWC row tiles with
    # memory_space=pl.ANY + manual make_async_copy) to avoid the ~k*k/s^2 HBM
    # replication of x; largest remaining bandwidth lever on v5e.
    x_nhwc = jnp.transpose(x, (0, 2, 3, 1))
    win = _extract_windows(x_nhwc, k, s, p, Ho, Wo)            # (kk,B,Ho,Wo,C)
    patchesT = jnp.transpose(win, (1, 0, 4, 2, 3)).reshape(B, KC, HWo)
    patchesT = jnp.pad(patchesT, ((0, 0), (0, 0), (0, HWo_pad - HWo)))
    patchesT = patchesT.astype(jnp.bfloat16)

    # ---- weights: bf16 MXU operands, f32 accumulation in-kernel ------------
    w1T = jnp.transpose(w1, (0, 2, 3, 1)).reshape(Cout, KC).astype(jnp.bfloat16)
    wrT = params["wr"].reshape(Cout, Cin).astype(jnp.bfloat16)
    b1 = params["b1"].reshape(Cout, 1).astype(jnp.float32)
    br = params["br"].reshape(Cout, 1).astype(jnp.float32)

    # ---- pooling / lane validity masks (no int div/mod inside the kernel) --
    mask = _pool_masks(k, s, p, H, W, Ho, Wo, HWo, HWo_pad)    # (kk+1, HWo_pad)

    kernel1 = functools.partial(conv_res_stats_kernel, k=k, Cin=Cin, Cout=Cout)

    def _const(shape):
        # TODO(synk): pipeline_mode=pl.Buffered(1) for these constant-index
        # blocks once single-buffering is guaranteed; operands are small after
        # dropping the block-diagonal weight, so the VMEM win is minor.
        return pl.BlockSpec(shape, lambda b, j: (0,) * len(shape))

    yT, rT, stats = pl.pallas_call(
        kernel1,
        out_shape=(jax.ShapeDtypeStruct((B, Cout, HWo_pad), jnp.bfloat16),
                   jax.ShapeDtypeStruct((B, Cout, HWo_pad), jnp.bfloat16),
                   jax.ShapeDtypeStruct((B, 2 * Cout, 1), jnp.float32)),
        grid=(B, num_w),
        in_specs=[
            pl.BlockSpec((1, KC, TW), lambda b, j: (b, 0, j)),
            _const((Cout, KC)),
            _const((Cout, Cin)),
            _const((Cout, 1)),
            _const((Cout, 1)),
            pl.BlockSpec((kk + 1, TW), lambda b, j: (0, j)),
        ],
        out_specs=(
            pl.BlockSpec((1, Cout, TW), lambda b, j: (b, 0, j)),
            pl.BlockSpec((1, Cout, TW), lambda b, j: (b, 0, j)),
            pl.BlockSpec((1, 2 * Cout, 1), lambda b, j: (b, 0, 0)),
        ),
        compiler_params=pltpu.CompilerParams(
            # batch parallel (megacore when B >= 2); spatial axis is the BN
            # stats accumulation axis -> arbitrary and trailing.
            dimension_semantics=("parallel", "arbitrary"),
            vmem_limit_bytes=vmem_limit),
    )(patchesT, w1T, wrT, b1, br, mask)

    # ---- finalize global BatchNorm batch statistics (tiny reduction) -------
    # TODO(synk): running_mean / running_var updates (training-mode PyTorch
    # BatchNorm side effect) are not produced here.
    n_tot = jnp.float32(B * HWo)
    sums = jnp.sum(stats, axis=0)                              # (2*Cout, 1)
    mean = sums[:Cout] / n_tot
    var = jnp.maximum(sums[Cout:] / n_tot - mean * mean, 0.0)  # biased var

    # ---- cond MLP once; fold BN affine + cond scale/shift into A, Bc -------
    cs = jnp.maximum(cond, 0.0) @ params["wm"] + params["bm"]  # (B, 2*Cout)
    scaleT = cs[:, :Cout].reshape(B, Cout, 1)
    shiftT = cs[:, Cout:].reshape(B, Cout, 1)
    g = params["gamma"].reshape(Cout, 1) * lax.rsqrt(var + EPS)
    beta = params["beta"].reshape(Cout, 1)
    sp1 = scaleT + 1.0
    A = (g[None, :, :] * sp1).astype(jnp.float32)              # (B, Cout, 1)
    Bc = ((beta - mean * g)[None, :, :] * sp1 + shiftT).astype(jnp.float32)

    out = pl.pallas_call(
        affine_act_res_kernel,
        out_shape=jax.ShapeDtypeStruct((B, Cout, HWo_pad), jnp.float32),
        grid=(B, num_w),
        in_specs=[
            pl.BlockSpec((1, Cout, TW), lambda b, j: (b, 0, j)),
            pl.BlockSpec((1, Cout, TW), lambda b, j: (b, 0, j)),
            pl.BlockSpec((1, Cout, 1), lambda b, j: (b, 0, 0)),
            pl.BlockSpec((1, Cout, 1), lambda b, j: (b, 0, 0)),
        ],
        out_specs=pl.BlockSpec((1, Cout, TW), lambda b, j: (b, 0, j)),
        compiler_params=pltpu.CompilerParams(
            dimension_semantics=("parallel", "parallel"),
            vmem_limit_bytes=vmem_limit),
    )(yT, rT, A, Bc)

    return out[:, :, :HWo].reshape(B, Cout, Ho, Wo)            # already NCHW


# --------------------------------------------------------------------------
# Pure-JAX reference mirroring the PyTorch forward (NCHW)
# --------------------------------------------------------------------------
def reference_forward(x, cond, params, conv_params):
    k, s, p = conv_params
    w1 = params["w1"]
    Cout = w1.shape[0]
    y = lax.conv_general_dilated(x, w1, (s, s), [(p, p), (p, p)],
                                 dimension_numbers=("NCHW", "OIHW", "NCHW"))
    y = y + params["b1"].reshape(1, Cout, 1, 1)
    mean = jnp.mean(y, axis=(0, 2, 3), keepdims=True)
    var = jnp.mean(jnp.square(y - mean), axis=(0, 2, 3), keepdims=True)
    y = (y - mean) / jnp.sqrt(var + EPS)
    y = y * params["gamma"].reshape(1, Cout, 1, 1) + params["beta"].reshape(1, Cout, 1, 1)
    cs = jnp.maximum(cond, 0.0) @ params["wm"] + params["bm"]
    scale = cs[:, :Cout].reshape(-1, Cout, 1, 1)
    shift = cs[:, Cout:].reshape(-1, Cout, 1, 1)
    y = y * (scale + 1.0) + shift
    y = jnp.where(y >= 0.0, y, NEG_SLOPE * y)
    r = lax.conv_general_dilated(x, params["wr"], (1, 1), [(0, 0), (0, 0)],
                                 dimension_numbers=("NCHW", "OIHW", "NCHW"))
    r = r + params["br"].reshape(1, Cout, 1, 1)
    r = lax.reduce_window(r, -jnp.inf, lax.max, (1, 1, k, k), (1, 1, s, s),
                          ((0, 0), (0, 0), (p, p), (p, p)))
    return y + r


if __name__ == "__main__":
    B, Cin, H, W = 2, 4, 16, 16
    Cout = 8
    cond_dim = 16
    conv_params = (3, 2, 1)          # (kernel, stride, padding)
    k, s, p = conv_params

    keys = jax.random.split(jax.random.PRNGKey(0), 10)
    x = jax.random.normal(keys[0], (B, Cin, H, W), jnp.float32)
    cond = jax.random.normal(keys[1], (B, cond_dim), jnp.float32)

    params = dict(
        w1=0.2 * jax.random.normal(keys[2], (Cout, Cin, k, k), jnp.float32),
        b1=0.1 * jax.random.normal(keys[3], (Cout,), jnp.float32),
        gamma=1.0 + 0.1 * jax.random.normal(keys[4], (Cout,), jnp.float32),
        beta=0.1 * jax.random.normal(keys[5], (Cout,), jnp.float32),
        wm=0.2 * jax.random.normal(keys[6], (cond_dim, 2 * Cout), jnp.float32),
        bm=0.1 * jax.random.normal(keys[7], (2 * Cout,), jnp.float32),
        wr=0.2 * jax.random.normal(keys[8], (Cout, Cin, 1, 1), jnp.float32),
        br=0.1 * jax.random.normal(keys[9], (Cout,), jnp.float32),
    )

    out = jax.block_until_ready(resnet_block_forward(x, cond, params, conv_params))
    ref = reference_forward(x, cond, params, conv_params)

    assert out.shape == ref.shape, (out.shape, ref.shape)
    max_err = float(jnp.max(jnp.abs(out - ref)))
    # bf16 MXU operands + bf16 inter-pass intermediates -> looser tolerance
    # than the pure-f32 version (reference is full f32).
    assert jnp.allclose(out, ref, rtol=5e-2, atol=5e-2), f"max abs err = {max_err}"
    print("KERNEL_OK")
</pallas_src>

<mosaic_0001>
module attributes {stable_mosaic.version = 11 : i64} {
  func.func @conv_res_stats_kernel(%arg0: i32, %arg1: i32, %arg2: memref<1x36x128xbf16, #tpu.memory_space<vmem>>, %arg3: memref<8x36xbf16, #tpu.memory_space<vmem>>, %arg4: memref<8x4xbf16, #tpu.memory_space<vmem>>, %arg5: memref<8x1xf32, #tpu.memory_space<vmem>>, %arg6: memref<8x1xf32, #tpu.memory_space<vmem>>, %arg7: memref<10x128xf32, #tpu.memory_space<vmem>>, %arg8: memref<1x8x128xbf16, #tpu.memory_space<vmem>>, %arg9: memref<1x8x128xbf16, #tpu.memory_space<vmem>>, %arg10: memref<1x16x1xf32, #tpu.memory_space<vmem>>) attributes {dimension_semantics = [#tpu.dimension_semantics<parallel>, #tpu.dimension_semantics<arbitrary>], iteration_bounds = array<i64: 2, 1>, scalar_prefetch = 0 : i64, scratch_operands = 0 : i64, tpu.core_type = #tpu.core_type<tc>, window_params = [{transform_indices = @transform_0, window_bounds = array<i64: 1, 36, 128>}, {pipeline_mode = #tpu.pipeline_mode<synchronous>, transform_indices = @transform_1, window_bounds = array<i64: 8, 36>}, {pipeline_mode = #tpu.pipeline_mode<synchronous>, transform_indices = @transform_2, window_bounds = array<i64: 8, 4>}, {pipeline_mode = #tpu.pipeline_mode<synchronous>, transform_indices = @transform_3, window_bounds = array<i64: 8, 1>}, {pipeline_mode = #tpu.pipeline_mode<synchronous>, transform_indices = @transform_4, window_bounds = array<i64: 8, 1>}, {transform_indices = @transform_5, window_bounds = array<i64: 10, 128>}, {transform_indices = @transform_6, window_bounds = array<i64: 1, 8, 128>}, {transform_indices = @transform_7, window_bounds = array<i64: 1, 8, 128>}, {transform_indices = @transform_8, window_bounds = array<i64: 1, 16, 1>}]} {
    %c0 = arith.constant 0 : index
    %c0_0 = arith.constant 0 : index
    %c0_1 = arith.constant 0 : index
    %0 = vector.load %arg2[%c0, %c0_0, %c0_1] : memref<1x36x128xbf16, #tpu.memory_space<vmem>>, vector<1x36x128xbf16>
    %1 = vector.shape_cast %0 : vector<1x36x128xbf16> to vector<36x128xbf16>
    %c0_2 = arith.constant 0 : index
    %c0_3 = arith.constant 0 : index
    %2 = vector.load %arg7[%c0_2, %c0_3] : memref<10x128xf32, #tpu.memory_space<vmem>>, vector<10x128xf32>
    %c0_4 = arith.constant 0 : index
    %c0_5 = arith.constant 0 : index
    %3 = vector.load %arg3[%c0_4, %c0_5] : memref<8x36xbf16, #tpu.memory_space<vmem>>, vector<8x36xbf16>
    %cst = arith.constant dense<0.000000e+00> : vector<8x128xf32>
    %4 = tpu.matmul %3, %1, %cst {dimension_numbers = #tpu.dot_dimension_numbers<[1], [0], [0], [1], [0, 0, 1, 1], [], []>} : vector<8x36xbf16>, vector<36x128xbf16>, vector<8x128xf32> -> vector<8x128xf32>
    %c0_6 = arith.constant 0 : index
    %c0_7 = arith.constant 0 : index
    %5 = vector.load %arg5[%c0_6, %c0_7] : memref<8x1xf32, #tpu.memory_space<vmem>>, vector<8x1xf32>
    %6 = vector.broadcast %5 : vector<8x1xf32> to vector<8x128xf32>
    %7 = arith.addf %4, %6 : vector<8x128xf32>
    %8 = arith.truncf %7 : vector<8x128xf32> to vector<8x128xbf16>
    %c0_8 = arith.constant 0 : index
    %c0_9 = arith.constant 0 : index
    %c0_10 = arith.constant 0 : index
    %9 = vector.load %arg8[%c0_8, %c0_9, %c0_10] : memref<1x8x128xbf16, #tpu.memory_space<vmem>>, vector<1x8x128xbf16>
    %10 = vector.shape_cast %9 : vector<1x8x128xbf16> to vector<8x128xbf16>
    %11 = vector.shape_cast %8 : vector<8x128xbf16> to vector<1x8x128xbf16>
    tpu.vector_store %arg8[%c0_8, %c0_9, %c0_10], %11 {strides = array<i32>} : memref<1x8x128xbf16, #tpu.memory_space<vmem>>, vector<1x8x128xbf16>,
    %12 = vector.extract_strided_slice %2 {offsets = [0, 0], sizes = [1, 128], strides = [1, 1]} : vector<10x128xf32> to vector<1x128xf32>
    %c0_i32 = arith.constant 0 : i32
    %13 = arith.cmpi eq, %arg1, %c0_i32 : i32
    %14 = arith.extui %13 : i1 to i32
    %c0_i32_11 = arith.constant 0 : i32
    %15 = arith.cmpi ne, %14, %c0_i32_11 : i32
    scf.if %15 {
      %cst_75 = arith.constant 0.000000e+00 : f32
      %142 = vector.broadcast %cst_75 : f32 to vector<1x16x1xf32>
      %c0_76 = arith.constant 0 : index
      %c0_77 = arith.constant 0 : index
      %c0_78 = arith.constant 0 : index
      %143 = vector.load %arg10[%c0_76, %c0_77, %c0_78] : memref<1x16x1xf32, #tpu.memory_space<vmem>>, vector<1x16x1xf32>
      tpu.vector_store %arg10[%c0_76, %c0_77, %c0_78], %142 {strides = array<i32>} : memref<1x16x1xf32, #tpu.memory_space<vmem>>, vector<1x16x1xf32>,
    } else {
    }
    %c0_12 = arith.constant 0 : index
    %c0_13 = arith.constant 0 : index
    %c0_14 = arith.constant 0 : index
    %16 = vector.load %arg10[%c0_12, %c0_13, %c0_14] : memref<1x16x1xf32, #tpu.memory_space<vmem>>, vector<1x8x1xf32>
    %17 = vector.shape_cast %16 : vector<1x8x1xf32> to vector<8x1xf32>
    %18 = vector.broadcast %12 : vector<1x128xf32> to vector<8x128xf32>
    %19 = arith.mulf %7, %18 : vector<8x128xf32>
    %cst_15 = arith.constant dense<0.000000e+00> : vector<8xf32>
    %20 = vector.multi_reduction <add>, %19, %cst_15 [1] : vector<8x128xf32> to vector<8xf32>
    %21 = vector.shape_cast %20 : vector<8xf32> to vector<8x1xf32>
    %22 = arith.addf %17, %21 : vector<8x1xf32>
    %c0_16 = arith.constant 0 : index
    %c0_17 = arith.constant 0 : index
    %c0_18 = arith.constant 0 : index
    %23 = vector.load %arg10[%c0_16, %c0_17, %c0_18] : memref<1x16x1xf32, #tpu.memory_space<vmem>>, vector<1x8x1xf32>
    %24 = vector.shape_cast %23 : vector<1x8x1xf32> to vector<8x1xf32>
    %25 = vector.shape_cast %22 : vector<8x1xf32> to vector<1x8x1xf32>
    tpu.vector_store %arg10[%c0_16, %c0_17, %c0_18], %25 {strides = array<i32>} : memref<1x16x1xf32, #tpu.memory_space<vmem>>, vector<1x8x1xf32>,
    %c0_19 = arith.constant 0 : index
    %c8 = arith.constant 8 : index
    %c0_20 = arith.constant 0 : index
    %26 = vector.load %arg10[%c0_19, %c8, %c0_20] : memref<1x16x1xf32, #tpu.memory_space<vmem>>, vector<1x8x1xf32>
    %27 = vector.shape_cast %26 : vector<1x8x1xf32> to vector<8x1xf32>
    %28 = arith.mulf %7, %7 : vector<8x128xf32>
    %29 = vector.broadcast %12 : vector<1x128xf32> to vector<8x128xf32>
    %30 = arith.mulf %28, %29 : vector<8x128xf32>
    %cst_21 = arith.constant dense<0.000000e+00> : vector<8xf32>
    %31 = vector.multi_reduction <add>, %30, %cst_21 [1] : vector<8x128xf32> to vector<8xf32>
    %32 = vector.shape_cast %31 : vector<8xf32> to vector<8x1xf32>
    %33 = arith.addf %27, %32 : vector<8x1xf32>
    %c0_22 = arith.constant 0 : index
    %c8_23 = arith.constant 8 : index
    %c0_24 = arith.constant 0 : index
    %34 = vector.load %arg10[%c0_22, %c8_23, %c0_24] : memref<1x16x1xf32, #tpu.memory_space<vmem>>, vector<1x8x1xf32>
    %35 = vector.shape_cast %34 : vector<1x8x1xf32> to vector<8x1xf32>
    %36 = vector.shape_cast %33 : vector<8x1xf32> to vector<1x8x1xf32>
    tpu.vector_store %arg10[%c0_22, %c8_23, %c0_24], %36 {strides = array<i32>} : memref<1x16x1xf32, #tpu.memory_space<vmem>>, vector<1x8x1xf32>,
    %c0_25 = arith.constant 0 : index
    %c0_26 = arith.constant 0 : index
    %37 = vector.load %arg4[%c0_25, %c0_26] : memref<8x4xbf16, #tpu.memory_space<vmem>>, vector<8x4xbf16>
    %38 = vector.extract_strided_slice %1 {offsets = [0, 0], sizes = [4, 128], strides = [1, 1]} : vector<36x128xbf16> to vector<4x128xbf16>
    %cst_27 = arith.constant dense<0.000000e+00> : vector<8x128xf32>
    %39 = tpu.matmul %37, %38, %cst_27 {dimension_numbers = #tpu.dot_dimension_numbers<[1], [0], [0], [1], [0, 0, 1, 1], [], []>} : vector<8x4xbf16>, vector<4x128xbf16>, vector<8x128xf32> -> vector<8x128xf32>
    %40 = vector.extract_strided_slice %2 {offsets = [1, 0], sizes = [1, 128], strides = [1, 1]} : vector<10x128xf32> to vector<1x128xf32>
    %cst_28 = arith.constant 5.000000e-01 : f32
    %41 = vector.broadcast %cst_28 : f32 to vector<1x128xf32>
    %42 = arith.cmpf ogt, %40, %41 : vector<1x128xf32>
    %cst_29 = arith.constant -1.000000e+30 : f32
    %43 = vector.shape_cast %42 : vector<1x128xi1> to vector<1x128xi1>
    %44 = vector.broadcast %43 : vector<1x128xi1> to vector<8x128xi1>
    %45 = vector.broadcast %cst_29 : f32 to vector<8x128xf32>
    %46 = arith.select %44, %39, %45 : vector<8x128xi1>, vector<8x128xf32>
    %c0_30 = arith.constant 0 : index
    %c0_31 = arith.constant 0 : index
    %47 = vector.load %arg4[%c0_30, %c0_31] : memref<8x4xbf16, #tpu.memory_space<vmem>>, vector<8x4xbf16>
    %48 = vector.extract_strided_slice %1 {offsets = [4, 0], sizes = [4, 128], strides = [1, 1]} : vector<36x128xbf16> to vector<4x128xbf16>
    %cst_32 = arith.constant dense<0.000000e+00> : vector<8x128xf32>
    %49 = tpu.matmul %47, %48, %cst_32 {dimension_numbers = #tpu.dot_dimension_numbers<[1], [0], [0], [1], [0, 0, 1, 1], [], []>} : vector<8x4xbf16>, vector<4x128xbf16>, vector<8x128xf32> -> vector<8x128xf32>
    %50 = vector.extract_strided_slice %2 {offsets = [2, 0], sizes = [1, 128], strides = [1, 1]} : vector<10x128xf32> to vector<1x128xf32>
    %cst_33 = arith.constant 5.000000e-01 : f32
    %51 = vector.broadcast %cst_33 : f32 to vector<1x128xf32>
    %52 = arith.cmpf ogt, %50, %51 : vector<1x128xf32>
    %cst_34 = arith.constant -1.000000e+30 : f32
    %53 = vector.shape_cast %52 : vector<1x128xi1> to vector<1x128xi1>
    %54 = vector.broadcast %53 : vector<1x128xi1> to vector<8x128xi1>
    %55 = vector.broadcast %cst_34 : f32 to vector<8x128xf32>
    %56 = arith.select %54, %49, %55 : vector<8x128xi1>, vector<8x128xf32>
    %57 = arith.maximumf %46, %56 : vector<8x128xf32>
    %c0_35 = arith.constant 0 : index
    %c0_36 = arith.constant 0 : index
    %58 = vector.load %arg4[%c0_35, %c0_36] : memref<8x4xbf16, #tpu.memory_space<vmem>>, vector<8x4xbf16>
    %59 = vector.extract_strided_slice %1 {offsets = [8, 0], sizes = [4, 128], strides = [1, 1]} : vector<36x128xbf16> to vector<4x128xbf16>
    %cst_37 = arith.constant dense<0.000000e+00> : vector<8x128xf32>
    %60 = tpu.matmul %58, %59, %cst_37 {dimension_numbers = #tpu.dot_dimension_numbers<[1], [0], [0], [1], [0, 0, 1, 1], [], []>} : vector<8x4xbf16>, vector<4x128xbf16>, vector<8x128xf32> -> vector<8x128xf32>
    %61 = vector.extract_strided_slice %2 {offsets = [3, 0], sizes = [1, 128], strides = [1, 1]} : vector<10x128xf32> to vector<1x128xf32>
    %cst_38 = arith.constant 5.000000e-01 : f32
    %62 = vector.broadcast %cst_38 : f32 to vector<1x128xf32>
    %63 = arith.cmpf ogt, %61, %62 : vector<1x128xf32>
    %cst_39 = arith.constant -1.000000e+30 : f32
    %64 = vector.shape_cast %63 : vector<1x128xi1> to vector<1x128xi1>
    %65 = vector.broadcast %64 : vector<1x128xi1> to vector<8x128xi1>
    %66 = vector.broadcast %cst_39 : f32 to vector<8x128xf32>
    %67 = arith.select %65, %60, %66 : vector<8x128xi1>, vector<8x128xf32>
    %68 = arith.maximumf %57, %67 : vector<8x128xf32>
    %c0_40 = arith.constant 0 : index
    %c0_41 = arith.constant 0 : index
    %69 = vector.load %arg4[%c0_40, %c0_41] : memref<8x4xbf16, #tpu.memory_space<vmem>>, vector<8x4xbf16>
    %70 = vector.extract_strided_slice %1 {offsets = [12, 0], sizes = [4, 128], strides = [1, 1]} : vector<36x128xbf16> to vector<4x128xbf16>
    %cst_42 = arith.constant dense<0.000000e+00> : vector<8x128xf32>
    %71 = tpu.matmul %69, %70, %cst_42 {dimension_numbers = #tpu.dot_dimension_numbers<[1], [0], [0], [1], [0, 0, 1, 1], [], []>} : vector<8x4xbf16>, vector<4x128xbf16>, vector<8x128xf32> -> vector<8x128xf32>
    %72 = vector.extract_strided_slice %2 {offsets = [4, 0], sizes = [1, 128], strides = [1, 1]} : vector<10x128xf32> to vector<1x128xf32>
    %cst_43 = arith.constant 5.000000e-01 : f32
    %73 = vector.broadcast %cst_43 : f32 to vector<1x128xf32>
    %74 = arith.cmpf ogt, %72, %73 : vector<1x128xf32>
    %cst_44 = arith.constant -1.000000e+30 : f32
    %75 = vector.shape_cast %74 : vector<1x128xi1> to vector<1x128xi1>
    %76 = vector.broadcast %75 : vector<1x128xi1> to vector<8x128xi1>
    %77 = vector.broadcast %cst_44 : f32 to vector<8x128xf32>
    %78 = arith.select %76, %71, %77 : vector<8x128xi1>, vector<8x128xf32>
    %79 = arith.maximumf %68, %78 : vector<8x128xf32>
    %c0_45 = arith.constant 0 : index
    %c0_46 = arith.constant 0 : index
    %80 = vector.load %arg4[%c0_45, %c0_46] : memref<8x4xbf16, #tpu.memory_space<vmem>>, vector<8x4xbf16>
    %81 = vector.extract_strided_slice %1 {offsets = [16, 0], sizes = [4, 128], strides = [1, 1]} : vector<36x128xbf16> to vector<4x128xbf16>
    %cst_47 = arith.constant dense<0.000000e+00> : vector<8x128xf32>
    %82 = tpu.matmul %80, %81, %cst_47 {dimension_numbers = #tpu.dot_dimension_numbers<[1], [0], [0], [1], [0, 0, 1, 1], [], []>} : vector<8x4xbf16>, vector<4x128xbf16>, vector<8x128xf32> -> vector<8x128xf32>
    %83 = vector.extract_strided_slice %2 {offsets = [5, 0], sizes = [1, 128], strides = [1, 1]} : vector<10x128xf32> to vector<1x128xf32>
    %cst_48 = arith.constant 5.000000e-01 : f32
    %84 = vector.broadcast %cst_48 : f32 to vector<1x128xf32>
    %85 = arith.cmpf ogt, %83, %84 : vector<1x128xf32>
    %cst_49 = arith.constant -1.000000e+30 : f32
    %86 = vector.shape_cast %85 : vector<1x128xi1> to vector<1x128xi1>
    %87 = vector.broadcast %86 : vector<1x128xi1> to vector<8x128xi1>
    %88 = vector.broadcast %cst_49 : f32 to vector<8x128xf32>
    %89 = arith.select %87, %82, %88 : vector<8x128xi1>, vector<8x128xf32>
    %90 = arith.maximumf %79, %89 : vector<8x128xf32>
    %c0_50 = arith.constant 0 : index
    %c0_51 = arith.constant 0 : index
    %91 = vector.load %arg4[%c0_50, %c0_51] : memref<8x4xbf16, #tpu.memory_space<vmem>>, vector<8x4xbf16>
    %92 = vector.extract_strided_slice %1 {offsets = [20, 0], sizes = [4, 128], strides = [1, 1]} : vector<36x128xbf16> to vector<4x128xbf16>
    %cst_52 = arith.constant dense<0.000000e+00> : vector<8x128xf32>
    %93 = tpu.matmul %91, %92, %cst_52 {dimension_numbers = #tpu.dot_dimension_numbers<[1], [0], [0], [1], [0, 0, 1, 1], [], []>} : vector<8x4xbf16>, vector<4x128xbf16>, vector<8x128xf32> -> vector<8x128xf32>
    %94 = vector.extract_strided_slice %2 {offsets = [6, 0], sizes = [1, 128], strides = [1, 1]} : vector<10x128xf32> to vector<1x128xf32>
    %cst_53 = arith.constant 5.000000e-01 : f32
    %95 = vector.broadcast %cst_53 : f32 to vector<1x128xf32>
    %96 = arith.cmpf ogt, %94, %95 : vector<1x128xf32>
    %cst_54 = arith.constant -1.000000e+30 : f32
    %97 = vector.shape_cast %96 : vector<1x128xi1> to vector<1x128xi1>
    %98 = vector.broadcast %97 : vector<1x128xi1> to vector<8x128xi1>
    %99 = vector.broadcast %cst_54 : f32 to vector<8x128xf32>
    %100 = arith.select %98, %93, %99 : vector<8x128xi1>, vector<8x128xf32>
    %101 = arith.maximumf %90, %100 : vector<8x128xf32>
    %c0_55 = arith.constant 0 : index
    %c0_56 = arith.constant 0 : index
    %102 = vector.load %arg4[%c0_55, %c0_56] : memref<8x4xbf16, #tpu.memory_space<vmem>>, vector<8x4xbf16>
    %103 = vector.extract_strided_slice %1 {offsets = [24, 0], sizes = [4, 128], strides = [1, 1]} : vector<36x128xbf16> to vector<4x128xbf16>
    %cst_57 = arith.constant dense<0.000000e+00> : vector<8x128xf32>
    %104 = tpu.matmul %102, %103, %cst_57 {dimension_numbers = #tpu.dot_dimension_numbers<[1], [0], [0], [1], [0, 0, 1, 1], [], []>} : vector<8x4xbf16>, vector<4x128xbf16>, vector<8x128xf32> -> vector<8x128xf32>
    %105 = vector.extract_strided_slice %2 {offsets = [7, 0], sizes = [1, 128], strides = [1, 1]} : vector<10x128xf32> to vector<1x128xf32>
    %cst_58 = arith.constant 5.000000e-01 : f32
    %106 = vector.broadcast %cst_58 : f32 to vector<1x128xf32>
    %107 = arith.cmpf ogt, %105, %106 : vector<1x128xf32>
    %cst_59 = arith.constant -1.000000e+30 : f32
    %108 = vector.shape_cast %107 : vector<1x128xi1> to vector<1x128xi1>
    %109 = vector.broadcast %108 : vector<1x128xi1> to vector<8x128xi1>
    %110 = vector.broadcast %cst_59 : f32 to vector<8x128xf32>
    %111 = arith.select %109, %104, %110 : vector<8x128xi1>, vector<8x128xf32>
    %112 = arith.maximumf %101, %111 : vector<8x128xf32>
    %c0_60 = arith.constant 0 : index
    %c0_61 = arith.constant 0 : index
    %113 = vector.load %arg4[%c0_60, %c0_61] : memref<8x4xbf16, #tpu.memory_space<vmem>>, vector<8x4xbf16>
    %114 = vector.extract_strided_slice %1 {offsets = [28, 0], sizes = [4, 128], strides = [1, 1]} : vector<36x128xbf16> to vector<4x128xbf16>
    %cst_62 = arith.constant dense<0.000000e+00> : vector<8x128xf32>
    %115 = tpu.matmul %113, %114, %cst_62 {dimension_numbers = #tpu.dot_dimension_numbers<[1], [0], [0], [1], [0, 0, 1, 1], [], []>} : vector<8x4xbf16>, vector<4x128xbf16>, vector<8x128xf32> -> vector<8x128xf32>
    %116 = vector.extract_strided_slice %2 {offsets = [8, 0], sizes = [1, 128], strides = [1, 1]} : vector<10x128xf32> to vector<1x128xf32>
    %cst_63 = arith.constant 5.000000e-01 : f32
    %117 = vector.broadcast %cst_63 : f32 to vector<1x128xf32>
    %118 = arith.cmpf ogt, %116, %117 : vector<1x128xf32>
    %cst_64 = arith.constant -1.000000e+30 : f32
    %119 = vector.shape_cast %118 : vector<1x128xi1> to vector<1x128xi1>
    %120 = vector.broadcast %119 : vector<1x128xi1> to vector<8x128xi1>
    %121 = vector.broadcast %cst_64 : f32 to vector<8x128xf32>
    %122 = arith.select %120, %115, %121 : vector<8x128xi1>, vector<8x128xf32>
    %123 = arith.maximumf %112, %122 : vector<8x128xf32>
    %c0_65 = arith.constant 0 : index
    %c0_66 = arith.constant 0 : index
    %124 = vector.load %arg4[%c0_65, %c0_66] : memref<8x4xbf16, #tpu.memory_space<vmem>>, vector<8x4xbf16>
    %125 = vector.extract_strided_slice %1 {offsets = [32, 0], sizes = [4, 128], strides = [1, 1]} : vector<36x128xbf16> to vector<4x128xbf16>
    %cst_67 = arith.constant dense<0.000000e+00> : vector<8x128xf32>
    %126 = tpu.matmul %124, %125, %cst_67 {dimension_numbers = #tpu.dot_dimension_numbers<[1], [0], [0], [1], [0, 0, 1, 1], [], []>} : vector<8x4xbf16>, vector<4x128xbf16>, vector<8x128xf32> -> vector<8x128xf32>
    %127 = vector.extract_strided_slice %2 {offsets = [9, 0], sizes = [1, 128], strides = [1, 1]} : vector<10x128xf32> to vector<1x128xf32>
    %cst_68 = arith.constant 5.000000e-01 : f32
    %128 = vector.broadcast %cst_68 : f32 to vector<1x128xf32>
    %129 = arith.cmpf ogt, %127, %128 : vector<1x128xf32>
    %cst_69 = arith.constant -1.000000e+30 : f32
    %130 = vector.shape_cast %129 : vector<1x128xi1> to vector<1x128xi1>
    %131 = vector.broadcast %130 : vector<1x128xi1> to vector<8x128xi1>
    %132 = vector.broadcast %cst_69 : f32 to vector<8x128xf32>
    %133 = arith.select %131, %126, %132 : vector<8x128xi1>, vector<8x128xf32>
    %134 = arith.maximumf %123, %133 : vector<8x128xf32>
    %c0_70 = arith.constant 0 : index
    %c0_71 = arith.constant 0 : index
    %135 = vector.load %arg6[%c0_70, %c0_71] : memref<8x1xf32, #tpu.memory_space<vmem>>, vector<8x1xf32>
    %136 = vector.broadcast %135 : vector<8x1xf32> to vector<8x128xf32>
    %137 = arith.addf %134, %136 : vector<8x128xf32>
    %138 = arith.truncf %137 : vector<8x128xf32> to vector<8x128xbf16>
    %c0_72 = arith.constant 0 : index
    %c0_73 = arith.constant 0 : index
    %c0_74 = arith.constant 0 : index
    %139 = vector.load %arg9[%c0_72, %c0_73, %c0_74] : memref<1x8x128xbf16, #tpu.memory_space<vmem>>, vector<1x8x128xbf16>
    %140 = vector.shape_cast %139 : vector<1x8x128xbf16> to vector<8x128xbf16>
    %141 = vector.shape_cast %138 : vector<8x128xbf16> to vector<1x8x128xbf16>
    tpu.vector_store %arg9[%c0_72, %c0_73, %c0_74], %141 {strides = array<i32>} : memref<1x8x128xbf16, #tpu.memory_space<vmem>>, vector<1x8x128xbf16>,
    return
  }
  func.func @transform_0(%arg0: i32, %arg1: i32) -> (i32, i32, i32) {
    %c0_i32 = arith.constant 0 : i32
    %c0_i32_0 = arith.constant 0 : i32
    return %arg0, %c0_i32, %arg1 : i32, i32, i32
  }
  func.func @transform_1(%arg0: i32, %arg1: i32) -> (i32, i32) {
    %c0_i32 = arith.constant 0 : i32
    %c0_i32_0 = arith.constant 0 : i32
    %c0_i32_1 = arith.constant 0 : i32
    return %c0_i32, %c0_i32_0 : i32, i32
  }
  func.func @transform_2(%arg0: i32, %arg1: i32) -> (i32, i32) {
    %c0_i32 = arith.constant 0 : i32
    %c0_i32_0 = arith.constant 0 : i32
    %c0_i32_1 = arith.constant 0 : i32
    return %c0_i32, %c0_i32_0 : i32, i32
  }
  func.func @transform_3(%arg0: i32, %arg1: i32) -> (i32, i32) {
    %c0_i32 = arith.constant 0 : i32
    %c0_i32_0 = arith.constant 0 : i32
    %c0_i32_1 = arith.constant 0 : i32
    return %c0_i32, %c0_i32_0 : i32, i32
  }
  func.func @transform_4(%arg0: i32, %arg1: i32) -> (i32, i32) {
    %c0_i32 = arith.constant 0 : i32
    %c0_i32_0 = arith.constant 0 : i32
    %c0_i32_1 = arith.constant 0 : i32
    return %c0_i32, %c0_i32_0 : i32, i32
  }
  func.func @transform_5(%arg0: i32, %arg1: i32) -> (i32, i32) {
    %c0_i32 = arith.constant 0 : i32
    %c0_i32_0 = arith.constant 0 : i32
    return %c0_i32, %arg1 : i32, i32
  }
  func.func @transform_6(%arg0: i32, %arg1: i32) -> (i32, i32, i32) {
    %c0_i32 = arith.constant 0 : i32
    %c0_i32_0 = arith.constant 0 : i32
    return %arg0, %c0_i32, %arg1 : i32, i32, i32
  }
  func.func @transform_7(%arg0: i32, %arg1: i32) -> (i32, i32, i32) {
    %c0_i32 = arith.constant 0 : i32
    %c0_i32_0 = arith.constant 0 : i32
    return %arg0, %c0_i32, %arg1 : i32, i32, i32
  }
  func.func @transform_8(%arg0: i32, %arg1: i32) -> (i32, i32, i32) {
    %c0_i32 = arith.constant 0 : i32
    %c0_i32_0 = arith.constant 0 : i32
    %c0_i32_1 = arith.constant 0 : i32
    return %arg0, %c0_i32, %c0_i32_0 : i32, i32, i32
  }
}

</mosaic_0001>

<llo_original>
// kernel: tpu_custom_call.1
$region0: #{tpu_custom_call.1}
  #allocation0 [shape = 'u32[]', space=smem, size = 0x4, offset = 0x4, fixed_abs, tag = 'smem constant byte address 0x4 - core index']
  #allocation1 [shape = 'u32[144,128]{1,0:T(1,128)}', space=vmem, size = 0x12000, scoped, tag = 'internal scratch']
  %s0 = inlined_call_operand.vmem [shape: bf16[2,36,128], index: 0, kind: input, shape index: {}]
  %s1 = inlined_call_operand.vmem [shape: bf16[8,36], index: 1, kind: input, shape index: {}]
  %s2 = inlined_call_operand.vmem [shape: bf16[8,4], index: 2, kind: input, shape index: {}]
  %s3 = inlined_call_operand.vmem [shape: f32[8,1], index: 3, kind: input, shape index: {}]
  %s4 = inlined_call_operand.vmem [shape: f32[8,1], index: 4, kind: input, shape index: {}]
  %s5 = inlined_call_operand.vmem [shape: f32[10,128], index: 5, kind: input, shape index: {}]
  %s6 = inlined_call_operand.hbm [shape: bf16[2,8,128], index: 6, kind: output, shape index: {0}]
  %s7 = inlined_call_operand.hbm [shape: bf16[2,8,128], index: 7, kind: output, shape index: {1}]
  %s8 = inlined_call_operand.vmem [shape: f32[2,16,1], index: 8, kind: output, shape index: {2}]
  %9 = xla_tuple %s6, %s7, %s8
  %s10 = sld [smem:[#allocation0]]
  $region77: #{tpu_custom_call.1} parent=0
    _
  %s12 = ssub.s32 1, %s10
  %s13 = scalar_select 0, %s12, %s10
  $region1: #{tpu_custom_call.1} parent=0
    #allocation2 [shape = 'u8[4096]{0}', space=vmem, size = 0x1000, scoped, tag = 'output window, operand 0']
    #allocation3 [shape = 's32[2]{0}', space=sflag, size = 0x8, scoped, tag = 'scoped memory for tpu_custom_call.1']
    #allocation4 [shape = 'u8[4096]{0}', space=vmem, size = 0x1000, scoped, tag = 'output window, operand 1']
    #allocation5 [shape = 's32[2]{0}', space=sflag, size = 0x8, scoped, tag = 'scoped memory for tpu_custom_call.1']
    %14 = vsyncpa [#allocation3], 0
    %s15 = scalar_lea.sflag [#allocation3], 1
    %16 = vsyncpa %s15, 0
    %17 = vsyncpa [#allocation5], 0
    %s18 = scalar_lea.sflag [#allocation5], 1
    %19 = vsyncpa %s18, 0
    loop: start=0, step=1, limit=4
    $region2: #{tpu_custom_call.1} parent=1 // loop_pre_header
      _
    $region3: #{tpu_custom_call.1} parent=1 // loop_header
      %s21 = sphi 0, %s25
      %p22 = scmp.ge.s32.totalorder %s21, 4
      %s28 = sphi 0, %s40
      %s29 = sphi 0, %s36
      %s30 = sphi 0, %s28
      %s31 = sphi 0, %s29
      %s32 = sphi 0, %s30
      %s33 = sphi 0, %s31
      %s45 = sphi 0, %s47
      %s48 = sphi 0, %s45
      %s49 = sphi 0, %s48
      %s65 = sphi 0, %s49
      %s69 = sphi 0, %s69
      %s71 = sphi 0, %s69
      %s72 = sphi 0, %s71
      %s86 = sphi 0, %s72
      %s90 = sphi 0, %s90
      %s92 = sphi 0, %s90
      %s93 = sphi 0, %s92
      %s107 = sphi 0, %s93
      %s111 = sphi 0, %s111
      %s113 = sphi 0, %s111
      %s114 = sphi 0, %s113
      %s128 = sphi 0, %s114
      %s132 = sphi 0, %s132
      %s134 = sphi 0, %s132
      %s135 = sphi 0, %s134
      %s149 = sphi 0, %s135
      %s155 = sphi 0, %s157
      %s158 = sphi 0, %s155
      %s159 = sphi 0, %s158
      %s175 = sphi 0, %s159
      %s183 = sphi 0, %s185
      %s186 = sphi 0, %s183
      %s187 = sphi 0, %s186
      %s203 = sphi 0, %s187
      %s211 = sphi 0, %s213
      %s214 = sphi 0, %s211
      %s215 = sphi 0, %s214
      %s231 = sphi 0, %s215
      %s237 = sphi 0, %s239
      %s240 = sphi 0, %s237
      %s241 = sphi 0, %s240
      %s257 = sphi 0, %s241
    $region4: #{tpu_custom_call.1} parent=1 // loop_header_branch
      %24 = sbr.rel (%p22) target = $region8
    $region5: #{tpu_custom_call.1} parent=1 // loop_body
      %s26 = ssub.s32 %s21, 1
      %s27 = ssub.s32 %s21, 2
      %s34 = sadd.s32 1, %s29
      %p35 = scmp.ge.s32.totalorder %s34, 1
      %s36 = scalar_select %p35, 0, %s34
      %s37 = sadd.s32 1, %s28
      %s38 = scalar_select %p35, %s37, %s28
      %p39 = scmp.ge.s32.totalorder %s38, 2
      %s40 = scalar_select %p39, 0, %s38
      %s41 = ssub.s32 %s28, %s40
      %s42 = ssub.s32 %s29, %s36
      %s43 = sor.u32 %s41, %s42
      %p44 = scmp.eq.s32.totalorder %s43, 0
      %s46 = sadd.s32 %s45, 1
      %s47 = scalar_select %p44, %s45, %s46
      %p50 = pneg %p44
      %p51 = scmp.eq.s32.totalorder %s21, 1
      %p52 = por %p50, %p51
      %p53 = scmp.ne.s32.totalorder %s45, %s48
      %p54 = scmp.eq.s32.totalorder %s21, 0
      %p55 = por %p53, %p54
      %p56 = scmp.ne.s32.totalorder %s45, %s48
      %p57 = scmp.eq.s32.totalorder %s26, 1
      %p58 = por %p56, %p57
      %p59 = scmp.ne.s32.totalorder %s48, %s49
      %p60 = scmp.eq.s32.totalorder %s26, 0
      %p61 = por %p59, %p60
      %p62 = scmp.ne.s32.totalorder %s48, %s49
      %p63 = scmp.eq.s32.totalorder %s27, 1
      %p64 = por %p62, %p63
      %p66 = scmp.ne.s32.totalorder %s49, %s65
      %p67 = scmp.eq.s32.totalorder %s27, 0
      %p68 = por %p66, %p67
      %s70 = sadd.s32 %s69, 1
      %p73 = scmp.eq.s32.totalorder %s21, 1
      %p74 = scmp.ne.s32.totalorder %s69, %s71
      %p75 = scmp.eq.s32.totalorder %s21, 0
      %p76 = por %p74, %p75
      %p77 = scmp.ne.s32.totalorder %s69, %s71
      %p78 = scmp.eq.s32.totalorder %s26, 1
      %p79 = por %p77, %p78
      %p80 = scmp.ne.s32.totalorder %s71, %s72
      %p81 = scmp.eq.s32.totalorder %s26, 0
      %p82 = por %p80, %p81
      %p83 = scmp.ne.s32.totalorder %s71, %s72
      %p84 = scmp.eq.s32.totalorder %s27, 1
      %p85 = por %p83, %p84
      %p87 = scmp.ne.s32.totalorder %s72, %s86
      %p88 = scmp.eq.s32.totalorder %s27, 0
      %p89 = por %p87, %p88
      %s91 = sadd.s32 %s90, 1
      %p94 = scmp.eq.s32.totalorder %s21, 1
      %p95 = scmp.ne.s32.totalorder %s90, %s92
      %p96 = scmp.eq.s32.totalorder %s21, 0
      %p97 = por %p95, %p96
      %p98 = scmp.ne.s32.totalorder %s90, %s92
      %p99 = scmp.eq.s32.totalorder %s26, 1
      %p100 = por %p98, %p99
      %p101 = scmp.ne.s32.totalorder %s92, %s93
      %p102 = scmp.eq.s32.totalorder %s26, 0
      %p103 = por %p101, %p102
      %p104 = scmp.ne.s32.totalorder %s92, %s93
      %p105 = scmp.eq.s32.totalorder %s27, 1
      %p106 = por %p104, %p105
      %p108 = scmp.ne.s32.totalorder %s93, %s107
      %p109 = scmp.eq.s32.totalorder %s27, 0
      %p110 = por %p108, %p109
      %s112 = sadd.s32 %s111, 1
      %p115 = scmp.eq.s32.totalorder %s21, 1
      %p116 = scmp.ne.s32.totalorder %s111, %s113
      %p117 = scmp.eq.s32.totalorder %s21, 0
      %p118 = por %p116, %p117
      %p119 = scmp.ne.s32.totalorder %s111, %s113
      %p120 = scmp.eq.s32.totalorder %s26, 1
      %p121 = por %p119, %p120
      %p122 = scmp.ne.s32.totalorder %s113, %s114
      %p123 = scmp.eq.s32.totalorder %s26, 0
      %p124 = por %p122, %p123
      %p125 = scmp.ne.s32.totalorder %s113, %s114
      %p126 = scmp.eq.s32.totalorder %s27, 1
      %p127 = por %p125, %p126
      %p129 = scmp.ne.s32.totalorder %s114, %s128
      %p130 = scmp.eq.s32.totalorder %s27, 0
      %p131 = por %p129, %p130
      %s133 = sadd.s32 %s132, 1
      %p136 = scmp.eq.s32.totalorder %s21, 1
      %p137 = scmp.ne.s32.totalorder %s132, %s134
      %p138 = scmp.eq.s32.totalorder %s21, 0
      %p139 = por %p137, %p138
      %p140 = scmp.ne.s32.totalorder %s132, %s134
      %p141 = scmp.eq.s32.totalorder %s26, 1
      %p142 = por %p140, %p141
      %p143 = scmp.ne.s32.totalorder %s134, %s135
      %p144 = scmp.eq.s32.totalorder %s26, 0
      %p145 = por %p143, %p144
      %p146 = scmp.ne.s32.totalorder %s134, %s135
      %p147 = scmp.eq.s32.totalorder %s27, 1
      %p148 = por %p146, %p147
      %p150 = scmp.ne.s32.totalorder %s135, %s149
      %p151 = scmp.eq.s32.totalorder %s27, 0
      %p152 = por %p150, %p151
      %s153 = ssub.s32 %s29, %s36
      %p154 = scmp.eq.s32.totalorder %s153, 0
      %s156 = sadd.s32 %s155, 1
      %s157 = scalar_select %p154, %s155, %s156
      %p160 = pneg %p154
      %p161 = scmp.eq.s32.totalorder %s21, 1
      %p162 = por %p160, %p161
      %p163 = scmp.ne.s32.totalorder %s155, %s158
      %p164 = scmp.eq.s32.totalorder %s21, 0
      %p165 = por %p163, %p164
      %p166 = scmp.ne.s32.totalorder %s155, %s158
      %p167 = scmp.eq.s32.totalorder %s26, 1
      %p168 = por %p166, %p167
      %p169 = scmp.ne.s32.totalorder %s158, %s159
      %p170 = scmp.eq.s32.totalorder %s26, 0
      %p171 = por %p169, %p170
      %p172 = scmp.ne.s32.totalorder %s158, %s159
      %p173 = scmp.eq.s32.totalorder %s27, 1
      %p174 = por %p172, %p173
      %p176 = scmp.ne.s32.totalorder %s159, %s175
      %p177 = scmp.eq.s32.totalorder %s27, 0
      %p178 = por %p176, %p177
      %s179 = ssub.s32 %s28, %s40
      %s180 = ssub.s32 %s29, %s36
      %s181 = sor.u32 %s179, %s180
      %p182 = scmp.eq.s32.totalorder %s181, 0
      %s184 = sadd.s32 %s183, 1
      %s185 = scalar_select %p182, %s183, %s184
      %p188 = pneg %p182
      %p189 = scmp.eq.s32.totalorder %s21, 1
      %p190 = por %p188, %p189
      %p191 = scmp.ne.s32.totalorder %s183, %s186
      %p192 = scmp.eq.s32.totalorder %s21, 0
      %p193 = por %p191, %p192
      %p194 = scmp.ne.s32.totalorder %s183, %s186
      %p195 = scmp.eq.s32.totalorder %s26, 1
      %p196 = por %p194, %p195
      %p197 = scmp.ne.s32.totalorder %s186, %s187
      %p198 = scmp.eq.s32.totalorder %s26, 0
      %p199 = por %p197, %p198
      %p200 = scmp.ne.s32.totalorder %s186, %s187
      %p201 = scmp.eq.s32.totalorder %s27, 1
      %p202 = por %p200, %p201
      %p204 = scmp.ne.s32.totalorder %s187, %s203
      %p205 = scmp.eq.s32.totalorder %s27, 0
      %p206 = por %p204, %p205
      %s207 = ssub.s32 %s28, %s40
      %s208 = ssub.s32 %s29, %s36
      %s209 = sor.u32 %s207, %s208
      %p210 = scmp.eq.s32.totalorder %s209, 0
      %s212 = sadd.s32 %s211, 1
      %s213 = scalar_select %p210, %s211, %s212
      %p216 = pneg %p210
      %p217 = scmp.eq.s32.totalorder %s21, 1
      %p218 = por %p216, %p217
      %p219 = scmp.ne.s32.totalorder %s211, %s214
      %p220 = scmp.eq.s32.totalorder %s21, 0
      %p221 = por %p219, %p220
      %p222 = scmp.ne.s32.totalorder %s211, %s214
      %p223 = scmp.eq.s32.totalorder %s26, 1
      %p224 = por %p222, %p223
      %p225 = scmp.ne.s32.totalorder %s214, %s215
      %p226 = scmp.eq.s32.totalorder %s26, 0
      %p227 = por %p225, %p226
      %p228 = scmp.ne.s32.totalorder %s214, %s215
      %p229 = scmp.eq.s32.totalorder %s27, 1
      %p230 = por %p228, %p229
      %p232 = scmp.ne.s32.totalorder %s215, %s231
      %p233 = scmp.eq.s32.totalorder %s27, 0
      %p234 = por %p232, %p233
      %s235 = ssub.s32 %s28, %s40
      %p236 = scmp.eq.s32.totalorder %s235, 0
      %s238 = sadd.s32 %s237, 1
      %s239 = scalar_select %p236, %s237, %s238
      %p242 = pneg %p236
      %p243 = scmp.eq.s32.totalorder %s21, 1
      %p244 = por %p242, %p243
      %p245 = scmp.ne.s32.totalorder %s237, %s240
      %p246 = scmp.eq.s32.totalorder %s21, 0
      %p247 = por %p245, %p246
      %p248 = scmp.ne.s32.totalorder %s237, %s240
      %p249 = scmp.eq.s32.totalorder %s26, 1
      %p250 = por %p248, %p249
      %p251 = scmp.ne.s32.totalorder %s240, %s241
      %p252 = scmp.eq.s32.totalorder %s26, 0
      %p253 = por %p251, %p252
      %p254 = scmp.ne.s32.totalorder %s240, %s241
      %p255 = scmp.eq.s32.totalorder %s27, 1
      %p256 = por %p254, %p255
      %p258 = scmp.ne.s32.totalorder %s241, %s257
      %p259 = scmp.eq.s32.totalorder %s27, 0
      %p260 = por %p258, %p259
      %p261 = scmp.le.s32.totalorder 1, %s21
      %p262 = scmp.lt.s32.totalorder %s21, 3
      %p263 = pnand %p261, %p262
      %p264 = pneg %p263
      // Predicated region
      $region9: #{tpu_custom_call.1} parent=5 // pred_check
        _
      $region10: #{tpu_custom_call.1} parent=5 // pred_check_branch
        %266 = sbr.rel (%p263) target = $region12
      $region11: #{tpu_custom_call.1} parent=5 // pred_region
        %s267 = ssub.s32 %s21, 1
        // Predicated region
        $region13: #{tpu_custom_call.1} parent=11 // pred_check
          %p268 = pneg %p82
        $region14: #{tpu_custom_call.1} parent=11 // pred_check_branch
          %270 = sbr.rel (%p268) target = $region16
        $region15: #{tpu_custom_call.1} parent=11 // pred_region
          _
        $region16: #{tpu_custom_call.1} parent=11 // pred_fallthru
          _
        // Predicated region
        $region17: #{tpu_custom_call.1} parent=11 // pred_check
          %p271 = pneg %p103
        $region18: #{tpu_custom_call.1} parent=11 // pred_check_branch
          %273 = sbr.rel (%p271) target = $region20
        $region19: #{tpu_custom_call.1} parent=11 // pred_region
          _
        $region20: #{tpu_custom_call.1} parent=11 // pred_fallthru
          _
        // Predicated region
        $region21: #{tpu_custom_call.1} parent=11 // pred_check
          %p274 = pneg %p124
        $region22: #{tpu_custom_call.1} parent=11 // pred_check_branch
          %276 = sbr.rel (%p274) target = $region24
        $region23: #{tpu_custom_call.1} parent=11 // pred_region
          _
        $region24: #{tpu_custom_call.1} parent=11 // pred_fallthru
          _
        // Predicated region
        $region25: #{tpu_custom_call.1} parent=11 // pred_check
          %p277 = pneg %p145
        $region26: #{tpu_custom_call.1} parent=11 // pred_check_branch
          %279 = sbr.rel (%p277) target = $region28
        $region27: #{tpu_custom_call.1} parent=11 // pred_region
          _
        $region28: #{tpu_custom_call.1} parent=11 // pred_fallthru
          _
        // Predicated region
        $region29: #{tpu_custom_call.1} parent=11 // pred_check
          %p280 = pneg %p171
        $region30: #{tpu_custom_call.1} parent=11 // pred_check_branch
          %282 = sbr.rel (%p280) target = $region32
        $region31: #{tpu_custom_call.1} parent=11 // pred_region
          %p283 = scmp.lt.s32.totalorder %s31, 0
          %s284 = scalar_select %p283, %s31, 0
          %s285 = smul.addr %s284, 8
          %s286 = scalar_lea.vmem %s5, %s285
        $region32: #{tpu_custom_call.1} parent=11 // pred_fallthru
          _
      $region12: #{tpu_custom_call.1} parent=5 // pred_fallthru
        _
      %p287 = scmp.lt.s32.totalorder %s21, 2
      // Predicated region
      $region33: #{tpu_custom_call.1} parent=5 // pred_check
        %p288 = pneg %p287
      $region34: #{tpu_custom_call.1} parent=5 // pred_check_branch
        %290 = sbr.rel (%p288) target = $region36
      $region35: #{tpu_custom_call.1} parent=5 // pred_region
        // Predicated region
        $region37: #{tpu_custom_call.1} parent=35 // pred_check
          %p291 = pneg %p55
        $region38: #{tpu_custom_call.1} parent=35 // pred_check_branch
          %293 = sbr.rel (%p291) target = $region40
        $region39: #{tpu_custom_call.1} parent=35 // pred_region
          %p294 = scmp.lt.s32.totalorder %s28, 1
          %s295 = scalar_select %p294, %s28, 1
          %p296 = scmp.lt.s32.totalorder %s29, 0
          %s297 = scalar_select %p296, %s29, 0
          %s298 = smul.addr %s295, 5
          %s299 = sadd.s32 %s297, %s298
          %s300 = smul.addr %s299, 4
          %s301 = scalar_lea.vmem %s0, %s300
        $region40: #{tpu_custom_call.1} parent=35 // pred_fallthru
          _
      $region36: #{tpu_custom_call.1} parent=5 // pred_fallthru
        _
      %p302 = scmp.le.s32.totalorder 1, %s21
      %p303 = scmp.lt.s32.totalorder %s21, 3
      %p304 = pnand %p302, %p303
      %p305 = pneg %p304
      // Predicated region
      $region41: #{tpu_custom_call.1} parent=5 // pred_check
        _
      $region42: #{tpu_custom_call.1} parent=5 // pred_check_branch
        %307 = sbr.rel (%p304) target = $region44
      $region43: #{tpu_custom_call.1} parent=5 // pred_region
        %s308 = ssub.s32 %s21, 1
        %p309 = scmp.lt.s32.totalorder %s30, 1
        %s310 = scalar_select %p309, %s30, 1
        %p311 = scmp.lt.s32.totalorder %s31, 0
        %s312 = scalar_select %p311, %s31, 0
        %s313 = smul.addr %s310, 5
        %s314 = sadd.s32 %s312, %s313
        %s315 = smul.addr %s314, 4
        %s316 = scalar_lea.vmem %s0, %s315
        %p317 = pneg %p61
        %p318 = pneg %p58
        %p319 = pneg %p82
        %p320 = pneg %p79
        %p321 = pneg %p103
        %p322 = pneg %p100
        %p323 = pneg %p124
        %p324 = pneg %p121
        %p325 = pneg %p145
        %p326 = pneg %p142
        %p327 = scmp.lt.s32.totalorder %s31, 0
        %s328 = scalar_select %p327, %s31, 0
        %s329 = smul.addr %s328, 8
        %s330 = scalar_lea.vmem %s5, %s329
        %p331 = pneg %p171
        %p332 = pneg %p168
        %p333 = pneg %p199
        %p334 = pneg %p196
        %s335 = sand.u32 %s186, 1
        %s336 = scalar_lea.sflag [#allocation3], %s335
        %s337 = sand.u32 %s186, 1
        %s338 = smul.addr %s337, 4
        %s339 = scalar_lea.vmem [#allocation2], %s338
        %p340 = pneg %p227
        %p341 = pneg %p224
        %s342 = sand.u32 %s214, 1
        %s343 = scalar_lea.sflag [#allocation5], %s342
        %s344 = sand.u32 %s214, 1
        %s345 = smul.addr %s344, 4
        %s346 = scalar_lea.vmem [#allocation4], %s345
        %p347 = pneg %p253
        %p348 = pneg %p250
        %p349 = scmp.lt.s32.totalorder %s30, 1
        %s350 = scalar_select %p349, %s30, 1
        %s351 = smul.addr %s350, 2
        %s352 = smul.addr %s351, 8
        %s353 = scalar_lea.vmem %s8, %s352
        %p354 = scmp.lt.s32.totalorder %s30, 1
        %s355 = scalar_select %p354, %s30, 1
        %p356 = scmp.lt.s32.totalorder %s31, 0
        %s357 = scalar_select %p356, %s31, 0
        %s358 = smul.addr %s355, 5
        %s359 = sadd.s32 %s357, %s358
        %s360 = smul.addr %s359, 4
        %s361 = scalar_lea.vmem %s0, %s360
        %p362 = scmp.lt.s32.totalorder %s31, 0
        %s363 = scalar_select %p362, %s31, 0
        %s364 = smul.addr %s363, 8
        %s365 = scalar_lea.vmem %s5, %s364
        %p366 = scmp.lt.s32.totalorder %s30, 1
        %s367 = scalar_select %p366, %s30, 1
        %s368 = smul.addr %s367, 2
        %s369 = smul.addr %s368, 8
        %s370 = scalar_lea.vmem %s8, %s369
        %v372 = vld [vmem:[%s361] sm:$0xf]
        %v373 = vld [vmem:[%s361 + $0x4] sm:$0xf]
        %v374 = vld [vmem:[%s361 + $0x8] sm:$0xf]
        %v375 = vld [vmem:[%s361 + $0xc] sm:$0xf]
        %v376 = vld [vmem:[%s361 + $0x10] sm:$0x3]
        %v377 = vld [vmem:[%s365] sm:$0xff]
        %v378 = vld [vmem:[%s365 + $0x8] sm:$0x3]
        %v379 = vld [vmem:[%s1] sm:$0xf]
        %v380 = vld [vmem:[%s3] sm:$0xff]
        %382 = vset.pattern.permute.xlu0 0
        %383 = vperm.xlu0 %382, %v380
        %v384 = vpop.permute.xlu0 %383
        %v391 = vunpack.c.l.b16 %v372
        %v392 = vunpack.c.l.b16 %v373
        %v393 = vunpack.c.l.b16 %v374
        %v394 = vunpack.c.l.b16 %v375
        %v395 = vunpack.c.l.b16 %v376
        %v396 = vpack.c.b16 %v392, %v391
        %v397 = vpack.c.b16 %v394, %v393
        %v398 = vpack.c.b16 %v395, %v395
        %vm401 = vcmask 293888
        %v403 = vsel %vm401, %v379, 0
        %vm405 = vcmask 1041408
        %v407 = vsel %vm405, %v398, 0
        %409 = vmatprep.subr.bf16.mxu0 0
        %410 = vmatpush1.bf16.msra.mxu0 0
        %411 = vmatprep.subr.bf16.mxu0 0
        %412 = vmatpush1.bf16.msra.mxu0 0
        %413 = vmatprep.subr.bf16.mxu0 0
        %414 = vmatpush1.bf16.msra.mxu0 0
        %415 = vmatprep.subr.bf16.mxu0 0
        %416 = vmatpush1.bf16.msra.mxu0 0
        %417 = vmatprep.subr.bf16.mxu0 0
        %418 = vmatpush1.bf16.msra.mxu0 0
        %419 = vmatprep.subr.bf16.mxu0 0
        %420 = vmatpush1.bf16.msra.mxu0 %v407
        %421 = vmatprep.subr.bf16.mxu0 0
        %422 = vmatpush1.bf16.msra.mxu0 %v397
        %423 = vmatprep.subr.bf16.mxu0 0
        %424 = vmatpush1.bf16.msra.mxu0 %v396
        %425 = vmatprep.subr.bf16.mxu0 0
        %426 = vmatpush2.bf16.msra.mxu0 0
        %427 = vmatprep.subr.bf16.mxu0 0
        %428 = vmatpush2.bf16.msra.mxu0 0
        %429 = vmatprep.subr.bf16.mxu0 0
        %430 = vmatpush2.bf16.msra.mxu0 0
        %431 = vmatprep.subr.bf16.mxu0 0
        %432 = vmatpush2.bf16.msra.mxu0 0
        %433 = vmatprep.subr.bf16.mxu0 0
        %434 = vmatpush2.bf16.msra.mxu0 0
        %435 = vmatprep.subr.bf16.mxu0 0
        %436 = vmatpush2.bf16.msra.mxu0 0
        %437 = vmatprep.subr.bf16.mxu0 0
        %438 = vmatpush2.bf16.msra.mxu0 0
        %439 = vmatprep.subr.bf16.mxu0 0
        %440 = vmatpush2.bf16.msra.mxu0 0
        %441 = vmatprep.mubr.bf16.mxu0 0
        %442 = vmatmul.mubr.bf16.gmra.mxu0 %v403
        %v443 = vpop.f32.mrf.mxu0
        %v444 = vadd.f32 %v384, %v443
        %v445 = vpop.f32.mrf.mxu0
        %v446 = vpop.f32.mrf.mxu0
        %v447 = vpop.f32.mrf.mxu0
        %448 = vdwg.mxu0
        %v449 = vpack.c.bf16 %v444, %v444
        %450 = vst [vmem:[%s339] sm:$0xf] %v449
        %p451 = scmp.eq.s32.totalorder %s31, 0
        // Predicated region
        $region45: #{tpu_custom_call.1} parent=43 // pred_check
          %p452 = pneg %p451
        $region46: #{tpu_custom_call.1} parent=43 // pred_check_branch
          %454 = sbr.rel (%p452) target = $region48
        $region47: #{tpu_custom_call.1} parent=43 // pred_region
          %vm455 = vcmask 7168
          %456 = vst.msk [vmem:[%s370] sm:$0xff] %vm455, 0.0
          %457 = vst.msk [vmem:[%s370 + $0x8] sm:$0xff] %vm455, 0.0
        $region48: #{tpu_custom_call.1} parent=43 // pred_fallthru
          _
        %v458 = vld [vmem:[%s370] sm:$0xff]
        %v459 = vlaneseq
        %v460 = vshrl.u32 %v459, 7
        %v461 = vsub.s32 0, %v460
        %v462 = vrot.slane %v377, %v461
        %v463 = vmul.f32 %v444, %v462
        %464 = vadd.xlane.f32.xlu0 %v463
        %v465 = vpop.xlane.xlu0 %464
        %v466 = vadd.f32 %v458, %v465
        %vm467 = vcmask 7168
        %468 = vst.msk [vmem:[%s370] sm:$0xff] %vm467, %v466
        %v469 = vld [vmem:[%s370 + $0x8] sm:$0xff]
        %v470 = vmul.f32 %v444, %v444
        %v471 = vmul.f32 %v470, %v462
        %472 = vadd.xlane.f32.xlu0 %v471
        %v473 = vpop.xlane.xlu0 %472
        %v474 = vadd.f32 %v469, %v473
        %475 = vst.msk [vmem:[%s370 + $0x8] sm:$0xff] %vm467, %v474
        %v476 = vld [vmem:[%s2] sm:$0xf]
        %vm477 = vcmask 31744
        %v479 = vsel %vm477, %v476, 0
        %v482 = vsel %vm405, %v372, 0
        %484 = vmatprep.subr.bf16.mxu0 0
        %485 = vmatpush1.bf16.msra.mxu0 0
        %486 = vmatprep.subr.bf16.mxu0 0
        %487 = vmatpush1.bf16.msra.mxu0 0
        %488 = vmatprep.subr.bf16.mxu0 0
        %489 = vmatpush1.bf16.msra.mxu0 0
        %490 = vmatprep.subr.bf16.mxu0 0
        %491 = vmatpush1.bf16.msra.mxu0 0
        %492 = vmatprep.subr.bf16.mxu0 0
        %493 = vmatpush1.bf16.msra.mxu0 0
        %494 = vmatprep.subr.bf16.mxu0 0
        %495 = vmatpush1.bf16.msra.mxu0 0
        %496 = vmatprep.subr.bf16.mxu0 0
        %497 = vmatpush1.bf16.msra.mxu0 0
        %498 = vmatprep.subr.bf16.mxu0 0
        %499 = vmatpush1.bf16.msra.mxu0 %v482
        %500 = vmatprep.subr.bf16.mxu0 0
        %501 = vmatpush2.bf16.msra.mxu0 0
        %502 = vmatprep.subr.bf16.mxu0 0
        %503 = vmatpush2.bf16.msra.mxu0 0
        %504 = vmatprep.subr.bf16.mxu0 0
        %505 = vmatpush2.bf16.msra.mxu0 0
        %506 = vmatprep.subr.bf16.mxu0 0
        %507 = vmatpush2.bf16.msra.mxu0 0
        %508 = vmatprep.subr.bf16.mxu0 0
        %509 = vmatpush2.bf16.msra.mxu0 0
        %510 = vmatprep.subr.bf16.mxu0 0
        %511 = vmatpush2.bf16.msra.mxu0 0
        %512 = vmatprep.subr.bf16.mxu0 0
        %513 = vmatpush2.bf16.msra.mxu0 0
        %514 = vmatprep.subr.bf16.mxu0 0
        %515 = vmatpush2.bf16.msra.mxu0 0
        %516 = vmatprep.mubr.bf16.mxu0 0
        %517 = vmatmul.mubr.bf16.gmra.mxu0 %v479
        %v518 = vpop.f32.mrf.mxu0
        %v519 = vadd.f32 0.0, %v518
        %v520 = vpop.f32.mrf.mxu0
        %v521 = vpop.f32.mrf.mxu0
        %v522 = vpop.f32.mrf.mxu0
        %523 = vdwg.mxu0
        %vm524 = vcmp.gt.f32.partialorder %v377, 0.5
        %v525 = vsel %vm524, 1, 0
        %v526 = vlaneseq
        %v527 = vshrl.u32 %v526, 7
        %v528 = vsub.s32 1, %v527
        %v529 = vrot.slane %v525, %v528
        %vm530 = vcmp.eq.s32.totalorder %v529, 1
        %v531 = vsel %vm530, %v519, -1e+30
        %v532 = vpack.c.b16 %v391, %v391
        %v533 = vrot.slane %v532, 2
        %v535 = vsel %vm405, %v533, 0
        %537 = vmatprep.subr.bf16.mxu0 0
        %538 = vmatpush1.bf16.msra.mxu0 0
        %539 = vmatprep.subr.bf16.mxu0 0
        %540 = vmatpush1.bf16.msra.mxu0 0
        %541 = vmatprep.subr.bf16.mxu0 0
        %542 = vmatpush1.bf16.msra.mxu0 0
        %543 = vmatprep.subr.bf16.mxu0 0
        %544 = vmatpush1.bf16.msra.mxu0 0
        %545 = vmatprep.subr.bf16.mxu0 0
        %546 = vmatpush1.bf16.msra.mxu0 0
        %547 = vmatprep.subr.bf16.mxu0 0
        %548 = vmatpush1.bf16.msra.mxu0 0
        %549 = vmatprep.subr.bf16.mxu0 0
        %550 = vmatpush1.bf16.msra.mxu0 0
        %551 = vmatprep.subr.bf16.mxu0 0
        %552 = vmatpush1.bf16.msra.mxu0 %v535
        %553 = vmatprep.subr.bf16.mxu0 0
        %554 = vmatpush2.bf16.msra.mxu0 0
        %555 = vmatprep.subr.bf16.mxu0 0
        %556 = vmatpush2.bf16.msra.mxu0 0
        %557 = vmatprep.subr.bf16.mxu0 0
        %558 = vmatpush2.bf16.msra.mxu0 0
        %559 = vmatprep.subr.bf16.mxu0 0
        %560 = vmatpush2.bf16.msra.mxu0 0
        %561 = vmatprep.subr.bf16.mxu0 0
        %562 = vmatpush2.bf16.msra.mxu0 0
        %563 = vmatprep.subr.bf16.mxu0 0
        %564 = vmatpush2.bf16.msra.mxu0 0
        %565 = vmatprep.subr.bf16.mxu0 0
        %566 = vmatpush2.bf16.msra.mxu0 0
        %567 = vmatprep.subr.bf16.mxu0 0
        %568 = vmatpush2.bf16.msra.mxu0 0
        %569 = vmatprep.mubr.bf16.mxu0 0
        %570 = vmatmul.mubr.bf16.gmra.mxu0 %v479
        %v571 = vpop.f32.mrf.mxu0
        %v572 = vadd.f32 0.0, %v571
        %v573 = vpop.f32.mrf.mxu0
        %v574 = vpop.f32.mrf.mxu0
        %v575 = vpop.f32.mrf.mxu0
        %576 = vdwg.mxu0
        %v577 = vlaneseq
        %v578 = vshrl.u32 %v577, 7
        %v579 = vsub.s32 2, %v578
        %v580 = vrot.slane %v525, %v579
        %vm581 = vcmp.eq.s32.totalorder %v580, 1
        %v582 = vsel %vm581, %v572, -1e+30
        %v583 = vmax.f32 %v531, %v582
        %v585 = vsel %vm405, %v373, 0
        %587 = vmatprep.subr.bf16.mxu0 0
        %588 = vmatpush1.bf16.msra.mxu0 0
        %589 = vmatprep.subr.bf16.mxu0 0
        %590 = vmatpush1.bf16.msra.mxu0 0
        %591 = vmatprep.subr.bf16.mxu0 0
        %592 = vmatpush1.bf16.msra.mxu0 0
        %593 = vmatprep.subr.bf16.mxu0 0
        %594 = vmatpush1.bf16.msra.mxu0 0
        %595 = vmatprep.subr.bf16.mxu0 0
        %596 = vmatpush1.bf16.msra.mxu0 0
        %597 = vmatprep.subr.bf16.mxu0 0
        %598 = vmatpush1.bf16.msra.mxu0 0
        %599 = vmatprep.subr.bf16.mxu0 0
        %600 = vmatpush1.bf16.msra.mxu0 0
        %601 = vmatprep.subr.bf16.mxu0 0
        %602 = vmatpush1.bf16.msra.mxu0 %v585
        %603 = vmatprep.subr.bf16.mxu0 0
        %604 = vmatpush2.bf16.msra.mxu0 0
        %605 = vmatprep.subr.bf16.mxu0 0
        %606 = vmatpush2.bf16.msra.mxu0 0
        %607 = vmatprep.subr.bf16.mxu0 0
        %608 = vmatpush2.bf16.msra.mxu0 0
        %609 = vmatprep.subr.bf16.mxu0 0
        %610 = vmatpush2.bf16.msra.mxu0 0
        %611 = vmatprep.subr.bf16.mxu0 0
        %612 = vmatpush2.bf16.msra.mxu0 0
        %613 = vmatprep.subr.bf16.mxu0 0
        %614 = vmatpush2.bf16.msra.mxu0 0
        %615 = vmatprep.subr.bf16.mxu0 0
        %616 = vmatpush2.bf16.msra.mxu0 0
        %617 = vmatprep.subr.bf16.mxu0 0
        %618 = vmatpush2.bf16.msra.mxu0 0
        %619 = vmatprep.mubr.bf16.mxu0 0
        %620 = vmatmul.mubr.bf16.gmra.mxu0 %v479
        %v621 = vpop.f32.mrf.mxu0
        %v622 = vadd.f32 0.0, %v621
        %v623 = vpop.f32.mrf.mxu0
        %v624 = vpop.f32.mrf.mxu0
        %v625 = vpop.f32.mrf.mxu0
        %626 = vdwg.mxu0
        %v627 = vlaneseq
        %v628 = vshrl.u32 %v627, 7
        %v629 = vsub.s32 3, %v628
        %v630 = vrot.slane %v525, %v629
        %vm631 = vcmp.eq.s32.totalorder %v630, 1
        %v632 = vsel %vm631, %v622, -1e+30
        %v633 = vmax.f32 %v583, %v632
        %v634 = vpack.c.b16 %v392, %v392
        %v635 = vrot.slane %v634, 2
        %v637 = vsel %vm405, %v635, 0
        %639 = vmatprep.subr.bf16.mxu0 0
        %640 = vmatpush1.bf16.msra.mxu0 0
        %641 = vmatprep.subr.bf16.mxu0 0
        %642 = vmatpush1.bf16.msra.mxu0 0
        %643 = vmatprep.subr.bf16.mxu0 0
        %644 = vmatpush1.bf16.msra.mxu0 0
        %645 = vmatprep.subr.bf16.mxu0 0
        %646 = vmatpush1.bf16.msra.mxu0 0
        %647 = vmatprep.subr.bf16.mxu0 0
        %648 = vmatpush1.bf16.msra.mxu0 0
        %649 = vmatprep.subr.bf16.mxu0 0
        %650 = vmatpush1.bf16.msra.mxu0 0
        %651 = vmatprep.subr.bf16.mxu0 0
        %652 = vmatpush1.bf16.msra.mxu0 0
        %653 = vmatprep.subr.bf16.mxu0 0
        %654 = vmatpush1.bf16.msra.mxu0 %v637
        %655 = vmatprep.subr.bf16.mxu0 0
        %656 = vmatpush2.bf16.msra.mxu0 0
        %657 = vmatprep.subr.bf16.mxu0 0
        %658 = vmatpush2.bf16.msra.mxu0 0
        %659 = vmatprep.subr.bf16.mxu0 0
        %660 = vmatpush2.bf16.msra.mxu0 0
        %661 = vmatprep.subr.bf16.mxu0 0
        %662 = vmatpush2.bf16.msra.mxu0 0
        %663 = vmatprep.subr.bf16.mxu0 0
        %664 = vmatpush2.bf16.msra.mxu0 0
        %665 = vmatprep.subr.bf16.mxu0 0
        %666 = vmatpush2.bf16.msra.mxu0 0
        %667 = vmatprep.subr.bf16.mxu0 0
        %668 = vmatpush2.bf16.msra.mxu0 0
        %669 = vmatprep.subr.bf16.mxu0 0
        %670 = vmatpush2.bf16.msra.mxu0 0
        %671 = vmatprep.mubr.bf16.mxu0 0
        %672 = vmatmul.mubr.bf16.gmra.mxu0 %v479
        %v673 = vpop.f32.mrf.mxu0
        %v674 = vadd.f32 0.0, %v673
        %v675 = vpop.f32.mrf.mxu0
        %v676 = vpop.f32.mrf.mxu0
        %v677 = vpop.f32.mrf.mxu0
        %678 = vdwg.mxu0
        %v679 = vlaneseq
        %v680 = vshrl.u32 %v679, 7
        %v681 = vsub.s32 4, %v680
        %v682 = vrot.slane %v525, %v681
        %vm683 = vcmp.eq.s32.totalorder %v682, 1
        %v684 = vsel %vm683, %v674, -1e+30
        %v685 = vmax.f32 %v633, %v684
        %v687 = vsel %vm405, %v374, 0
        %689 = vmatprep.subr.bf16.mxu0 0
        %690 = vmatpush1.bf16.msra.mxu0 0
        %691 = vmatprep.subr.bf16.mxu0 0
        %692 = vmatpush1.bf16.msra.mxu0 0
        %693 = vmatprep.subr.bf16.mxu0 0
        %694 = vmatpush1.bf16.msra.mxu0 0
        %695 = vmatprep.subr.bf16.mxu0 0
        %696 = vmatpush1.bf16.msra.mxu0 0
        %697 = vmatprep.subr.bf16.mxu0 0
        %698 = vmatpush1.bf16.msra.mxu0 0
        %699 = vmatprep.subr.bf16.mxu0 0
        %700 = vmatpush1.bf16.msra.mxu0 0
        %701 = vmatprep.subr.bf16.mxu0 0
        %702 = vmatpush1.bf16.msra.mxu0 0
        %703 = vmatprep.subr.bf16.mxu0 0
        %704 = vmatpush1.bf16.msra.mxu0 %v687
        %705 = vmatprep.subr.bf16.mxu0 0
        %706 = vmatpush2.bf16.msra.mxu0 0
        %707 = vmatprep.subr.bf16.mxu0 0
        %708 = vmatpush2.bf16.msra.mxu0 0
        %709 = vmatprep.subr.bf16.mxu0 0
        %710 = vmatpush2.bf16.msra.mxu0 0
        %711 = vmatprep.subr.bf16.mxu0 0
        %712 = vmatpush2.bf16.msra.mxu0 0
        %713 = vmatprep.subr.bf16.mxu0 0
        %714 = vmatpush2.bf16.msra.mxu0 0
        %715 = vmatprep.subr.bf16.mxu0 0
        %716 = vmatpush2.bf16.msra.mxu0 0
        %717 = vmatprep.subr.bf16.mxu0 0
        %718 = vmatpush2.bf16.msra.mxu0 0
        %719 = vmatprep.subr.bf16.mxu0 0
        %720 = vmatpush2.bf16.msra.mxu0 0
        %721 = vmatprep.mubr.bf16.mxu0 0
        %722 = vmatmul.mubr.bf16.gmra.mxu0 %v479
        %v723 = vpop.f32.mrf.mxu0
        %v724 = vadd.f32 0.0, %v723
        %v725 = vpop.f32.mrf.mxu0
        %v726 = vpop.f32.mrf.mxu0
        %v727 = vpop.f32.mrf.mxu0
        %728 = vdwg.mxu0
        %v729 = vlaneseq
        %v730 = vshrl.u32 %v729, 7
        %v731 = vsub.s32 5, %v730
        %v732 = vrot.slane %v525, %v731
        %vm733 = vcmp.eq.s32.totalorder %v732, 1
        %v734 = vsel %vm733, %v724, -1e+30
        %v735 = vmax.f32 %v685, %v734
        %v736 = vpack.c.b16 %v393, %v393
        %v737 = vrot.slane %v736, 2
        %v739 = vsel %vm405, %v737, 0
        %741 = vmatprep.subr.bf16.mxu0 0
        %742 = vmatpush1.bf16.msra.mxu0 0
        %743 = vmatprep.subr.bf16.mxu0 0
        %744 = vmatpush1.bf16.msra.mxu0 0
        %745 = vmatprep.subr.bf16.mxu0 0
        %746 = vmatpush1.bf16.msra.mxu0 0
        %747 = vmatprep.subr.bf16.mxu0 0
        %748 = vmatpush1.bf16.msra.mxu0 0
        %749 = vmatprep.subr.bf16.mxu0 0
        %750 = vmatpush1.bf16.msra.mxu0 0
        %751 = vmatprep.subr.bf16.mxu0 0
        %752 = vmatpush1.bf16.msra.mxu0 0
        %753 = vmatprep.subr.bf16.mxu0 0
        %754 = vmatpush1.bf16.msra.mxu0 0
        %755 = vmatprep.subr.bf16.mxu0 0
        %756 = vmatpush1.bf16.msra.mxu0 %v739
        %757 = vmatprep.subr.bf16.mxu0 0
        %758 = vmatpush2.bf16.msra.mxu0 0
        %759 = vmatprep.subr.bf16.mxu0 0
        %760 = vmatpush2.bf16.msra.mxu0 0
        %761 = vmatprep.subr.bf16.mxu0 0
        %762 = vmatpush2.bf16.msra.mxu0 0
        %763 = vmatprep.subr.bf16.mxu0 0
        %764 = vmatpush2.bf16.msra.mxu0 0
        %765 = vmatprep.subr.bf16.mxu0 0
        %766 = vmatpush2.bf16.msra.mxu0 0
        %767 = vmatprep.subr.bf16.mxu0 0
        %768 = vmatpush2.bf16.msra.mxu0 0
        %769 = vmatprep.subr.bf16.mxu0 0
        %770 = vmatpush2.bf16.msra.mxu0 0
        %771 = vmatprep.subr.bf16.mxu0 0
        %772 = vmatpush2.bf16.msra.mxu0 0
        %773 = vmatprep.mubr.bf16.mxu0 0
        %774 = vmatmul.mubr.bf16.gmra.mxu0 %v479
        %v775 = vpop.f32.mrf.mxu0
        %v776 = vadd.f32 0.0, %v775
        %v777 = vpop.f32.mrf.mxu0
        %v778 = vpop.f32.mrf.mxu0
        %v779 = vpop.f32.mrf.mxu0
        %780 = vdwg.mxu0
        %v781 = vlaneseq
        %v782 = vshrl.u32 %v781, 7
        %v783 = vsub.s32 6, %v782
        %v784 = vrot.slane %v525, %v783
        %vm785 = vcmp.eq.s32.totalorder %v784, 1
        %v786 = vsel %vm785, %v776, -1e+30
        %v787 = vmax.f32 %v735, %v786
        %v789 = vsel %vm405, %v375, 0
        %791 = vmatprep.subr.bf16.mxu0 0
        %792 = vmatpush1.bf16.msra.mxu0 0
        %793 = vmatprep.subr.bf16.mxu0 0
        %794 = vmatpush1.bf16.msra.mxu0 0
        %795 = vmatprep.subr.bf16.mxu0 0
        %796 = vmatpush1.bf16.msra.mxu0 0
        %797 = vmatprep.subr.bf16.mxu0 0
        %798 = vmatpush1.bf16.msra.mxu0 0
        %799 = vmatprep.subr.bf16.mxu0 0
        %800 = vmatpush1.bf16.msra.mxu0 0
        %801 = vmatprep.subr.bf16.mxu0 0
        %802 = vmatpush1.bf16.msra.mxu0 0
        %803 = vmatprep.subr.bf16.mxu0 0
        %804 = vmatpush1.bf16.msra.mxu0 0
        %805 = vmatprep.subr.bf16.mxu0 0
        %806 = vmatpush1.bf16.msra.mxu0 %v789
        %807 = vmatprep.subr.bf16.mxu0 0
        %808 = vmatpush2.bf16.msra.mxu0 0
        %809 = vmatprep.subr.bf16.mxu0 0
        %810 = vmatpush2.bf16.msra.mxu0 0
        %811 = vmatprep.subr.bf16.mxu0 0
        %812 = vmatpush2.bf16.msra.mxu0 0
        %813 = vmatprep.subr.bf16.mxu0 0
        %814 = vmatpush2.bf16.msra.mxu0 0
        %815 = vmatprep.subr.bf16.mxu0 0
        %816 = vmatpush2.bf16.msra.mxu0 0
        %817 = vmatprep.subr.bf16.mxu0 0
        %818 = vmatpush2.bf16.msra.mxu0 0
        %819 = vmatprep.subr.bf16.mxu0 0
        %820 = vmatpush2.bf16.msra.mxu0 0
        %821 = vmatprep.subr.bf16.mxu0 0
        %822 = vmatpush2.bf16.msra.mxu0 0
        %823 = vmatprep.mubr.bf16.mxu0 0
        %824 = vmatmul.mubr.bf16.gmra.mxu0 %v479
        %v825 = vpop.f32.mrf.mxu0
        %v826 = vadd.f32 0.0, %v825
        %v827 = vpop.f32.mrf.mxu0
        %v828 = vpop.f32.mrf.mxu0
        %v829 = vpop.f32.mrf.mxu0
        %830 = vdwg.mxu0
        %v831 = vlaneseq
        %v832 = vshrl.u32 %v831, 7
        %v833 = vsub.s32 7, %v832
        %v834 = vrot.slane %v525, %v833
        %vm835 = vcmp.eq.s32.totalorder %v834, 1
        %v836 = vsel %vm835, %v826, -1e+30
        %v837 = vmax.f32 %v787, %v836
        %v838 = vpack.c.b16 %v394, %v394
        %v839 = vrot.slane %v838, 2
        %v841 = vsel %vm405, %v839, 0
        %843 = vmatprep.subr.bf16.mxu0 0
        %844 = vmatpush1.bf16.msra.mxu0 0
        %845 = vmatprep.subr.bf16.mxu0 0
        %846 = vmatpush1.bf16.msra.mxu0 0
        %847 = vmatprep.subr.bf16.mxu0 0
        %848 = vmatpush1.bf16.msra.mxu0 0
        %849 = vmatprep.subr.bf16.mxu0 0
        %850 = vmatpush1.bf16.msra.mxu0 0
        %851 = vmatprep.subr.bf16.mxu0 0
        %852 = vmatpush1.bf16.msra.mxu0 0
        %853 = vmatprep.subr.bf16.mxu0 0
        %854 = vmatpush1.bf16.msra.mxu0 0
        %855 = vmatprep.subr.bf16.mxu0 0
        %856 = vmatpush1.bf16.msra.mxu0 0
        %857 = vmatprep.subr.bf16.mxu0 0
        %858 = vmatpush1.bf16.msra.mxu0 %v841
        %859 = vmatprep.subr.bf16.mxu0 0
        %860 = vmatpush2.bf16.msra.mxu0 0
        %861 = vmatprep.subr.bf16.mxu0 0
        %862 = vmatpush2.bf16.msra.mxu0 0
        %863 = vmatprep.subr.bf16.mxu0 0
        %864 = vmatpush2.bf16.msra.mxu0 0
        %865 = vmatprep.subr.bf16.mxu0 0
        %866 = vmatpush2.bf16.msra.mxu0 0
        %867 = vmatprep.subr.bf16.mxu0 0
        %868 = vmatpush2.bf16.msra.mxu0 0
        %869 = vmatprep.subr.bf16.mxu0 0
        %870 = vmatpush2.bf16.msra.mxu0 0
        %871 = vmatprep.subr.bf16.mxu0 0
        %872 = vmatpush2.bf16.msra.mxu0 0
        %873 = vmatprep.subr.bf16.mxu0 0
        %874 = vmatpush2.bf16.msra.mxu0 0
        %875 = vmatprep.mubr.bf16.mxu0 0
        %876 = vmatmul.mubr.bf16.gmra.mxu0 %v479
        %v877 = vpop.f32.mrf.mxu0
        %v878 = vadd.f32 0.0, %v877
        %v879 = vpop.f32.mrf.mxu0
        %v880 = vpop.f32.mrf.mxu0
        %v881 = vpop.f32.mrf.mxu0
        %882 = vdwg.mxu0
        %vm883 = vcmp.gt.f32.partialorder %v378, 0.5
        %v884 = vsel %vm883, 1, 0
        %v885 = vlaneseq
        %v886 = vshrl.u32 %v885, 7
        %v887 = vsub.s32 0, %v886
        %v888 = vrot.slane %v884, %v887
        %vm889 = vcmp.eq.s32.totalorder %v888, 1
        %v890 = vsel %vm889, %v878, -1e+30
        %v891 = vmax.f32 %v837, %v890
        %v893 = vsel %vm405, %v376, 0
        %895 = vmatprep.subr.bf16.mxu0 0
        %896 = vmatpush1.bf16.msra.mxu0 0
        %897 = vmatprep.subr.bf16.mxu0 0
        %898 = vmatpush1.bf16.msra.mxu0 0
        %899 = vmatprep.subr.bf16.mxu0 0
        %900 = vmatpush1.bf16.msra.mxu0 0
        %901 = vmatprep.subr.bf16.mxu0 0
        %902 = vmatpush1.bf16.msra.mxu0 0
        %903 = vmatprep.subr.bf16.mxu0 0
        %904 = vmatpush1.bf16.msra.mxu0 0
        %905 = vmatprep.subr.bf16.mxu0 0
        %906 = vmatpush1.bf16.msra.mxu0 0
        %907 = vmatprep.subr.bf16.mxu0 0
        %908 = vmatpush1.bf16.msra.mxu0 0
        %909 = vmatprep.subr.bf16.mxu0 0
        %910 = vmatpush1.bf16.msra.mxu0 %v893
        %911 = vmatprep.subr.bf16.mxu0 0
        %912 = vmatpush2.bf16.msra.mxu0 0
        %913 = vmatprep.subr.bf16.mxu0 0
        %914 = vmatpush2.bf16.msra.mxu0 0
        %915 = vmatprep.subr.bf16.mxu0 0
        %916 = vmatpush2.bf16.msra.mxu0 0
        %917 = vmatprep.subr.bf16.mxu0 0
        %918 = vmatpush2.bf16.msra.mxu0 0
        %919 = vmatprep.subr.bf16.mxu0 0
        %920 = vmatpush2.bf16.msra.mxu0 0
        %921 = vmatprep.subr.bf16.mxu0 0
        %922 = vmatpush2.bf16.msra.mxu0 0
        %923 = vmatprep.subr.bf16.mxu0 0
        %924 = vmatpush2.bf16.msra.mxu0 0
        %925 = vmatprep.subr.bf16.mxu0 0
        %926 = vmatpush2.bf16.msra.mxu0 0
        %927 = vmatprep.mubr.bf16.mxu0 0
        %928 = vmatmul.mubr.bf16.gmra.mxu0 %v479
        %v929 = vpop.f32.mrf.mxu0
        %v930 = vadd.f32 0.0, %v929
        %v931 = vpop.f32.mrf.mxu0
        %v932 = vpop.f32.mrf.mxu0
        %v933 = vpop.f32.mrf.mxu0
        %934 = vdwg.mxu0
        %v935 = vlaneseq
        %v936 = vshrl.u32 %v935, 7
        %v937 = vsub.s32 1, %v936
        %v938 = vrot.slane %v884, %v937
        %vm939 = vcmp.eq.s32.totalorder %v938, 1
        %v940 = vsel %vm939, %v930, -1e+30
        %v941 = vmax.f32 %v891, %v940
        %v942 = vld [vmem:[%s4] sm:$0xff]
        %944 = vset.pattern.permute.xlu0 0
        %945 = vperm.xlu0 %944, %v942
        %v946 = vpop.permute.xlu0 %945
        %v948 = vadd.f32 %v941, %v946
        %v949 = vpack.c.bf16 %v948, %v948
        %950 = vst [vmem:[%s346] sm:$0xf] %v949
        %s951 = sand.u32 %s186, 1
        %s952 = scalar_lea.sflag [#allocation3], %s951
        %s953 = sand.u32 %s186, 1
        %s954 = smul.addr %s953, 4
        %s955 = scalar_lea.vmem [#allocation2], %s954
        %s956 = sand.u32 %s214, 1
        %s957 = scalar_lea.sflag [#allocation5], %s956
        %s958 = sand.u32 %s214, 1
        %s959 = smul.addr %s958, 4
        %s960 = scalar_lea.vmem [#allocation4], %s959
        %p961 = scmp.lt.s32.totalorder %s30, 1
        %s962 = scalar_select %p961, %s30, 1
        %s963 = smul.addr %s962, 2
        %s964 = smul.addr %s963, 8
        %s965 = scalar_lea.vmem %s8, %s964
        // Predicated region
        $region49: #{tpu_custom_call.1} parent=43 // pred_check
          %p966 = pneg %p196
        $region50: #{tpu_custom_call.1} parent=43 // pred_check_branch
          %968 = sbr.rel (%p966) target = $region52
        $region51: #{tpu_custom_call.1} parent=43 // pred_region
          %s970 = ssub.s32 64, 64
          %971 = vsyncadd %s952, %s970
          %s972 = sadd.s32 %s31, %s30
          %s973 = smul.addr %s972, 64
          %s974 = scalar_lea.hbm %s6, %s973
          %s976 = sshll.u32 %s955, 4
          %s977 = int_to_ptr.vmem [resolvable:$true] %s976
          %979 = dma.vmem_to_hbm [thread:$0]  %s977, 64, %s974, %s952
        $region52: #{tpu_custom_call.1} parent=43 // pred_fallthru
          _
        // Predicated region
        $region53: #{tpu_custom_call.1} parent=43 // pred_check
          %p980 = pneg %p224
        $region54: #{tpu_custom_call.1} parent=43 // pred_check_branch
          %982 = sbr.rel (%p980) target = $region56
        $region55: #{tpu_custom_call.1} parent=43 // pred_region
          %s984 = ssub.s32 64, 64
          %985 = vsyncadd %s957, %s984
          %s986 = sadd.s32 %s31, %s30
          %s987 = smul.addr %s986, 64
          %s988 = scalar_lea.hbm %s7, %s987
          %s990 = sshll.u32 %s960, 4
          %s991 = int_to_ptr.vmem [resolvable:$true] %s990
          %993 = dma.vmem_to_hbm [thread:$0]  %s991, 64, %s988, %s957
        $region56: #{tpu_custom_call.1} parent=43 // pred_fallthru
          _
        // Predicated region
        $region57: #{tpu_custom_call.1} parent=43 // pred_check
          %p994 = pneg %p250
        $region58: #{tpu_custom_call.1} parent=43 // pred_check_branch
          %996 = sbr.rel (%p994) target = $region60
        $region59: #{tpu_custom_call.1} parent=43 // pred_region
          _
        $region60: #{tpu_custom_call.1} parent=43 // pred_fallthru
          _
      $region44: #{tpu_custom_call.1} parent=5 // pred_fallthru
        _
      %p997 = scmp.le.s32.totalorder 2, %s21
      // Predicated region
      $region61: #{tpu_custom_call.1} parent=5 // pred_check
        %p998 = pneg %p997
      $region62: #{tpu_custom_call.1} parent=5 // pred_check_branch
        %1000 = sbr.rel (%p998) target = $region64
      $region63: #{tpu_custom_call.1} parent=5 // pred_region
        %s1001 = ssub.s32 %s21, 2
        // Predicated region
        $region65: #{tpu_custom_call.1} parent=63 // pred_check
          %p1002 = pneg %p202
        $region66: #{tpu_custom_call.1} parent=63 // pred_check_branch
          %1004 = sbr.rel (%p1002) target = $region68
        $region67: #{tpu_custom_call.1} parent=63 // pred_region
          %s1005 = sand.u32 %s187, 1
          %s1006 = scalar_lea.sflag [#allocation3], %s1005
          %s1007 = sand.u32 %s187, 1
          %s1008 = smul.addr %s1007, 4
          %s1009 = scalar_lea.vmem [#allocation2], %s1008
          %1010 = dma.done %s1006, 64
        $region68: #{tpu_custom_call.1} parent=63 // pred_fallthru
          _
        // Predicated region
        $region69: #{tpu_custom_call.1} parent=63 // pred_check
          %p1011 = pneg %p230
        $region70: #{tpu_custom_call.1} parent=63 // pred_check_branch
          %1013 = sbr.rel (%p1011) target = $region72
        $region71: #{tpu_custom_call.1} parent=63 // pred_region
          %s1014 = sand.u32 %s215, 1
          %s1015 = scalar_lea.sflag [#allocation5], %s1014
          %s1016 = sand.u32 %s215, 1
          %s1017 = smul.addr %s1016, 4
          %s1018 = scalar_lea.vmem [#allocation4], %s1017
          %1019 = dma.done %s1015, 64
        $region72: #{tpu_custom_call.1} parent=63 // pred_fallthru
          _
        // Predicated region
        $region73: #{tpu_custom_call.1} parent=63 // pred_check
          %p1020 = pneg %p256
        $region74: #{tpu_custom_call.1} parent=63 // pred_check_branch
          %1022 = sbr.rel (%p1020) target = $region76
        $region75: #{tpu_custom_call.1} parent=63 // pred_region
          %p1023 = scmp.lt.s32.totalorder %s32, 1
          %s1024 = scalar_select %p1023, %s32, 1
          %s1025 = smul.addr %s1024, 2
          %s1026 = smul.addr %s1025, 8
          %s1027 = scalar_lea.vmem %s8, %s1026
        $region76: #{tpu_custom_call.1} parent=63 // pred_fallthru
          _
      $region64: #{tpu_custom_call.1} parent=5 // pred_fallthru
        _
    $region6: #{tpu_custom_call.1} parent=1 // loop_footer
      %s25 = sadd.s32 1, %s21
    $region7: #{tpu_custom_call.1} parent=1 // loop_footer_branch
      %20 = sbr.rel target = $region3
    $region8: #{tpu_custom_call.1} parent=1 // loop_exit
      _
    %1028 = vsyncpa [#allocation3], 1
    %s1029 = scalar_lea.sflag [#allocation3], 1
    %1030 = vsyncpa %s1029, 1
    %1031 = vsyncpa [#allocation5], 1
    %s1032 = scalar_lea.sflag [#allocation5], 1
    %1033 = vsyncpa %s1032, 1

</llo_original>
